<compile_context>
chip_gen: v7x
topology: tpu7x:2x2x1
jax: 0.10.0
libtpu: 0.0.40
codegen_flags: <defaults>
</compile_context>

<pallas_src>
import math
import functools

import jax
import jax.numpy as jnp
from jax import lax
from jax.experimental import pallas as pl
from jax.experimental.pallas import tpu as pltpu

# ----------------- Config (small synthetic values) -----------------
NUM_HEAD = 4
HIDDEN = 8
TOTAL = NUM_HEAD * HIDDEN          # Config.total = 32
MAX_SEP_LEN = 16                   # Config.max_sep_len
FF = 64                            # Config.ff
NUM_LAYERS = 2                     # Config.num_layers
FOUR_POS_MODE = "ff_two"           # Config.four_pos_mode -> cat([pos_ss, pos_ee])
ADD_FF = True                      # Config.add_ff
LN_EPS = 1e-5
NEG_INF = -1e15                    # mask fill value used by the PyTorch module


# ----------------- sinusoidal table (get_embedding) -----------------
def get_embedding_jax(max_seq_len, embedding_dim):
    num_embeddings = 2 * max_seq_len + 1
    half_dim = embedding_dim // 2
    e = math.log(10000.0) / (half_dim - 1)
    e = jnp.exp(jnp.arange(half_dim, dtype=jnp.float32) * -e)
    e = jnp.arange(num_embeddings, dtype=jnp.float32)[:, None] * e[None, :]
    emb = jnp.concatenate([jnp.sin(e), jnp.cos(e)], axis=1).reshape(num_embeddings, -1)
    if embedding_dim % 2 == 1:
        emb = jnp.concatenate([emb, jnp.zeros((num_embeddings, 1), jnp.float32)], axis=1)
    return emb


# ----------------- the single fused kernel -----------------
def _fused_layer_kernel(valid_ref,
                        x1_ref, xrep_ref, cat_ref,
                        fw_ref, fb_ref,
                        wqkv_ref, bqkv_ref, uv_ref,
                        wr_ref, br_ref,
                        psel_ref, ksum_ref,
                        w1_ref, b1_ref, w2_ref, b2_ref,
                        o_ref, *, L, T):
    valid = valid_ref[pl.program_id(0)]        # int32 scalar: real_length + lex_num

    x1 = x1_ref[0]                             # (L, T)    query input (the residual)
    xrep = xrep_ref[0]                         # (L*L, 3T) [x1 per-q | x2 per-k | x3 per-k]
    cat = cat_ref[0]                           # (L*L, 2T) [pe_ss | pe_ee] gathered rows

    dot = functools.partial(jnp.dot, preferred_element_type=jnp.float32)

    # ---- Get_four_embedding fusion (Linear+ReLU) and w_r projection, all in VMEM ----
    rel = jnp.maximum(dot(cat, fw_ref[...]) + fb_ref[...], 0.0)       # (L*L, T)
    r = dot(rel, wr_ref[...]) + br_ref[...]                           # (L*L, T)

    # ---- merged q/k/v projection at the replicated (q,k) level: one MXU op ----
    big = dot(xrep, wqkv_ref[...]) + bqkv_ref[...]                    # (L*L, 3T)
    q_lin = big[:, 0:T]                        # (x1@wq + bq) replicated per query row
    k_rep = big[:, T:2 * T]                    # (x2@wk + bk) replicated per key row
    v_rep = big[:, 2 * T:3 * T]                # (x3@wv + bv) replicated per key row
    qu = q_lin + uv_ref[0:1, :]                # q + u      (head-major flattened)
    qv = q_lin + uv_ref[1:2, :]                # q + v_param

    # ---- relative-position attention scores, all heads, kept 32 lanes wide ----
    comb = qu * k_rep + qv * r                                        # (L*L, T)
    score = dot(comb, psel_ref[...])           # (L*L, T)  per-head (A+C)+(B+D), replicated
                                               #           across each head's 8 columns
    kid = lax.broadcasted_iota(jnp.int32, (L * L, T), 0)
    kid = jnp.bitwise_and(kid, L - 1) if (L & (L - 1)) == 0 else lax.rem(kid, L)
    score = jnp.where(kid < valid, score, NEG_INF)

    # No max shift: scores are O(1) here and masked entries underflow exp() to exactly 0.
    e = jnp.exp(score)                                                # (L*L, T)
    num = dot(ksum_ref[...], e * v_rep)                               # (L, T) sum_k p~*v
    den = dot(ksum_ref[...], e)                                       # (L, T) softmax denom
    attn = num * pl.reciprocal(jnp.maximum(den, 1e-30), approx=True)  # normalize after sum

    # ---- residual + LayerNorm (gamma=1, beta=0, eps=1e-5) ----
    res = x1 + attn
    mean = jnp.mean(res, axis=-1, keepdims=True)
    var = jnp.mean((res - mean) ** 2, axis=-1, keepdims=True)
    a = (res - mean) * lax.rsqrt(var + LN_EPS)

    # ---- positionwise FF: Linear-ReLU-Linear-ReLU (+residual) + LayerNorm ----
    h = jnp.maximum(dot(a, w1_ref[...]) + b1_ref[...], 0.0)
    y = jnp.maximum(dot(h, w2_ref[...]) + b2_ref[...], 0.0)
    if ADD_FF:
        y = y + a
    mean2 = jnp.mean(y, axis=-1, keepdims=True)
    var2 = jnp.mean((y - mean2) ** 2, axis=-1, keepdims=True)
    o_ref[0] = ((y - mean2) * lax.rsqrt(var2 + LN_EPS)).astype(o_ref.dtype)


def make_attention_constants(L, T):
    """Tiny constant 0/1 matrices: per-head column selector and per-query key-sum."""
    psel = (jnp.arange(T)[:, None] // HIDDEN ==
            jnp.arange(T)[None, :] // HIDDEN).astype(jnp.float32)     # (T, T)
    ksum = (jnp.arange(L)[:, None] ==
            (jnp.arange(L * L)[None, :] // L)).astype(jnp.float32)    # (L, L*L)
    return psel, ksum


def run_fused_layer(valid, x1, xrep, cat, fusion_w, fusion_b, flp, psel, ksum):
    B, L, T = x1.shape
    grid_spec = pltpu.PrefetchScalarGridSpec(
        num_scalar_prefetch=1,
        grid=(B,),
        in_specs=[
            pl.BlockSpec((1, L, T), lambda b, vl: (b, 0, 0)),           # x1 (residual)
            pl.BlockSpec((1, L * L, 3 * T), lambda b, vl: (b, 0, 0)),   # replicated inputs
            pl.BlockSpec((1, L * L, 2 * T), lambda b, vl: (b, 0, 0)),   # [pe_ss | pe_ee]
            pl.BlockSpec((2 * T, T), lambda b, vl: (0, 0)),             # fusion_w
            pl.BlockSpec((1, T), lambda b, vl: (0, 0)),                 # fusion_b
            pl.BlockSpec((3 * T, 3 * T), lambda b, vl: (0, 0)),         # blockdiag(wq,wk,wv)
            pl.BlockSpec((1, 3 * T), lambda b, vl: (0, 0)),             # [bq|bk|bv]
            pl.BlockSpec((2, T), lambda b, vl: (0, 0)),                 # u | v params (flat)
            pl.BlockSpec((T, T), lambda b, vl: (0, 0)),                 # wr
            pl.BlockSpec((1, T), lambda b, vl: (0, 0)),                 # br
            pl.BlockSpec((T, T), lambda b, vl: (0, 0)),                 # head selector Psel
            pl.BlockSpec((L, L * L), lambda b, vl: (0, 0)),             # key-sum matrix
            pl.BlockSpec((T, FF), lambda b, vl: (0, 0)),                # w1
            pl.BlockSpec((1, FF), lambda b, vl: (0, 0)),                # b1
            pl.BlockSpec((FF, T), lambda b, vl: (0, 0)),                # w2
            pl.BlockSpec((1, T), lambda b, vl: (0, 0)),                 # b2
        ],
        out_specs=pl.BlockSpec((1, L, T), lambda b, vl: (b, 0, 0)),
    )
    return pl.pallas_call(
        functools.partial(_fused_layer_kernel, L=L, T=T),
        out_shape=jax.ShapeDtypeStruct((B, L, T), jnp.float32),
        grid_spec=grid_spec,
        compiler_params=pltpu.CompilerParams(dimension_semantics=("parallel",)),
    )(valid, x1, xrep, cat, fusion_w, fusion_b,
      flp["wqkv"], flp["bqkv"], flp["uv"], flp["wr"], flp["br"],
      psel, ksum, flp["w1"], flp["b1"], flp["w2"], flp["b2"])


# ----------------- parameter init (deterministic) + hoisted weight fusing -----------------
def _fuse_layer_params(lp):
    T = TOTAL
    wqkv = jnp.zeros((3 * T, 3 * T), jnp.float32)
    wqkv = wqkv.at[0:T, 0:T].set(lp["wq"])
    wqkv = wqkv.at[T:2 * T, T:2 * T].set(lp["wk"])
    wqkv = wqkv.at[2 * T:, 2 * T:].set(lp["wv"])
    return dict(
        wqkv=wqkv,
        bqkv=jnp.concatenate([lp["bq"], lp["bk"], lp["bv"]]).reshape(1, 3 * T),
        uv=jnp.stack([lp["u"].reshape(-1), lp["vp"].reshape(-1)]),   # (2, T)
        wr=lp["wr"], br=lp["br"].reshape(1, T),
        w1=lp["w1"], b1=lp["b1"].reshape(1, FF),
        w2=lp["w2"], b2=lp["b2"].reshape(1, T),
    )


def init_params(key):
    params = {"pe": get_embedding_jax(MAX_SEP_LEN, TOTAL)}   # four_pos_shared=True
    in_fusion = 2 * TOTAL if FOUR_POS_MODE == "ff_two" else 4 * TOTAL
    key, kw = jax.random.split(key)
    params["fusion_w"] = jax.random.normal(kw, (in_fusion, TOTAL), jnp.float32) * 0.05
    key, kb = jax.random.split(key)
    params["fusion_b"] = jax.random.normal(kb, (TOTAL,), jnp.float32) * 0.05

    layers = []
    for _ in range(NUM_LAYERS):
        lp = {}
        for name, shp in [("wq", (TOTAL, TOTAL)), ("wk", (TOTAL, TOTAL)),
                          ("wv", (TOTAL, TOTAL)), ("wr", (TOTAL, TOTAL)),
                          ("w1", (TOTAL, FF)), ("w2", (FF, TOTAL)),
                          ("bq", (TOTAL,)), ("bk", (TOTAL,)), ("bv", (TOTAL,)),
                          ("br", (TOTAL,)), ("b1", (FF,)), ("b2", (TOTAL,)),
                          ("u", (NUM_HEAD, HIDDEN)), ("vp", (NUM_HEAD, HIDDEN))]:
            key, k1 = jax.random.split(key)
            lp[name] = jax.random.normal(k1, shp, jnp.float32) * 0.05
        layers.append(lp)
    params["layers"] = layers
    # Hoisted, precomputed kernel-facing tensors (built once, not per call).
    params["fused"] = {
        "fusion_w": params["fusion_w"],
        "fusion_b": params["fusion_b"].reshape(1, TOTAL),
        "layers": [_fuse_layer_params(lp) for lp in layers],
    }
    return params


# ----------------- Bert_lattice forward (Pallas) -----------------
def bert_lattice_forward(params, input1, input2, input3, lex_num, real_lengths, pos_s, pos_e):
    B, L, T = input1.shape
    pe = params["pe"]

    # Get_four_embedding ('ff_two'): sinusoidal-table gather stays in the wrapper (XLA
    # gather); the Linear+ReLU fusion runs inside the fused kernel.
    idx_ss = pos_s[:, :, None] - pos_s[:, None, :] + MAX_SEP_LEN
    idx_ee = pos_e[:, :, None] - pos_e[:, None, :] + MAX_SEP_LEN
    cat = jnp.concatenate([pe[idx_ss], pe[idx_ee]], axis=-1).reshape(B, L * L, 2 * T)

    # Replicated-input slab for the single block-diagonal q/k/v projection:
    # row (q*L + k) carries [x1[q] | x2[k] | x3[k]].  Pure data movement, fused by XLA
    # with the gather/concat above; removes every replication matmul from the kernel.
    x1r = jnp.broadcast_to(input1[:, :, None, :], (B, L, L, T)).reshape(B, L * L, T)
    x2r = jnp.broadcast_to(input2[:, None, :, :], (B, L, L, T)).reshape(B, L * L, T)
    x3r = jnp.broadcast_to(input3[:, None, :, :], (B, L, L, T)).reshape(B, L * L, T)
    xrep = jnp.concatenate([x1r, x2r, x3r], axis=-1)                  # (B, L*L, 3T)

    valid = jnp.asarray(real_lengths, jnp.int32) + jnp.asarray(lex_num, jnp.int32)
    psel, ksum = make_attention_constants(L, T)

    # The PyTorch loop feeds every layer the ORIGINAL inputs and overwrites `input`, so
    # only the LAST layer's output is returned; earlier layers are dead compute and are
    # skipped here (identical semantics).
    flp = params["fused"]["layers"][-1]
    return run_fused_layer(valid, input1, xrep, cat,
                           params["fused"]["fusion_w"], params["fused"]["fusion_b"],
                           flp, psel, ksum)


# ----------------- pure-JAX reference (for correctness check) -----------------
def ref_forward(params, input1, input2, input3, lex_num, real_lengths, pos_s, pos_e):
    B, L, T = input1.shape
    pe = params["pe"]

    def ln(x):
        m = jnp.mean(x, -1, keepdims=True)
        v = jnp.mean((x - m) ** 2, -1, keepdims=True)
        return (x - m) / jnp.sqrt(v + LN_EPS)

    idx_ss = pos_s[:, :, None] - pos_s[:, None, :] + MAX_SEP_LEN
    idx_ee = pos_e[:, :, None] - pos_e[:, None, :] + MAX_SEP_LEN
    cat = jnp.concatenate([pe[idx_ss], pe[idx_ee]], axis=-1)
    rel = jnp.maximum(cat @ params["fusion_w"] + params["fusion_b"], 0.0)      # (B,L,L,T)

    valid = jnp.asarray(real_lengths, jnp.int32) + jnp.asarray(lex_num, jnp.int32)
    mask = jnp.arange(L)[None, :] < valid[:, None]                              # (B, L)

    out = None
    for lp in params["layers"]:
        q = input1 @ lp["wq"] + lp["bq"]
        k = input2 @ lp["wk"] + lp["bk"]
        v = input3 @ lp["wv"] + lp["bv"]
        r = rel @ lp["wr"] + lp["br"]
        qh = q.reshape(B, L, NUM_HEAD, HIDDEN).transpose(0, 2, 1, 3)
        kh = k.reshape(B, L, NUM_HEAD, HIDDEN).transpose(0, 2, 1, 3)
        vh = v.reshape(B, L, NUM_HEAD, HIDDEN).transpose(0, 2, 1, 3)
        rh = r.reshape(B, L, L, NUM_HEAD, HIDDEN)
        ac = jnp.einsum("bhqd,bhkd->bhqk", qh + lp["u"][None, :, None, :], kh)
        bd = jnp.einsum("bhqd,bqkhd->bhqk", qh + lp["vp"][None, :, None, :], rh)
        score = jnp.where(mask[:, None, None, :], ac + bd, -1e15)
        p = jax.nn.softmax(score, axis=-1)
        ao = jnp.einsum("bhqk,bhkd->bhqd", p, vh).transpose(0, 2, 1, 3).reshape(B, L, T)
        a = ln(input1 + ao)
        h = jnp.maximum(a @ lp["w1"] + lp["b1"], 0.0)
        y = jnp.maximum(h @ lp["w2"] + lp["b2"], 0.0)
        if ADD_FF:
            y = y + a
        out = ln(y)
    return out


# ----------------- main -----------------
if __name__ == "__main__":
    B, L = 2, 8
    key = jax.random.PRNGKey(0)
    k1, k2, k3, k4, k5 = jax.random.split(key, 5)
    input1 = jax.random.normal(k1, (B, L, TOTAL), jnp.float32)
    input2 = jax.random.normal(k2, (B, L, TOTAL), jnp.float32)
    input3 = jax.random.normal(k3, (B, L, TOTAL), jnp.float32)
    pos_s = jax.random.randint(k4, (B, L), 0, L).astype(jnp.int32)
    pos_e = (pos_s + jax.random.randint(k5, (B, L), 0, L)).astype(jnp.int32)
    real_lengths = jnp.array([7, 6], jnp.int32)
    lex_num = jnp.array([1, 1], jnp.int32)

    params = init_params(jax.random.PRNGKey(42))

    fwd = jax.jit(bert_lattice_forward)
    out = fwd(params, input1, input2, input3, lex_num, real_lengths, pos_s, pos_e)
    out = jax.block_until_ready(out)

    ref = ref_forward(params, input1, input2, input3,
                      lex_num, real_lengths, pos_s, pos_e)

    assert out.shape == (B, L, TOTAL), out.shape
    assert bool(jnp.all(jnp.isfinite(out)))
    max_err = float(jnp.max(jnp.abs(out - ref)))
    assert max_err < 2e-3, f"mismatch vs reference: {max_err}"
    print("KERNEL_OK")
</pallas_src>

<mosaic_0001>
module attributes {stable_mosaic.version = 11 : i64} {
  func.func @_fused_layer_kernel(%arg0: i32, %arg1: memref<2xi32, #tpu.memory_space<smem>>, %arg2: memref<1x8x32xf32, #tpu.memory_space<vmem>>, %arg3: memref<1x64x96xf32, #tpu.memory_space<vmem>>, %arg4: memref<1x64x64xf32, #tpu.memory_space<vmem>>, %arg5: memref<64x32xf32, #tpu.memory_space<vmem>>, %arg6: memref<1x32xf32, #tpu.memory_space<vmem>>, %arg7: memref<96x96xf32, #tpu.memory_space<vmem>>, %arg8: memref<1x96xf32, #tpu.memory_space<vmem>>, %arg9: memref<2x32xf32, #tpu.memory_space<vmem>>, %arg10: memref<32x32xf32, #tpu.memory_space<vmem>>, %arg11: memref<1x32xf32, #tpu.memory_space<vmem>>, %arg12: memref<32x32xf32, #tpu.memory_space<vmem>>, %arg13: memref<8x64xf32, #tpu.memory_space<vmem>>, %arg14: memref<32x64xf32, #tpu.memory_space<vmem>>, %arg15: memref<1x64xf32, #tpu.memory_space<vmem>>, %arg16: memref<64x32xf32, #tpu.memory_space<vmem>>, %arg17: memref<1x32xf32, #tpu.memory_space<vmem>>, %arg18: memref<1x8x32xf32, #tpu.memory_space<vmem>>) attributes {dimension_semantics = [#tpu.dimension_semantics<parallel>], iteration_bounds = array<i64: 2>, scalar_prefetch = 1 : i64, scratch_operands = 0 : i64, tpu.core_type = #tpu.core_type<tc>, window_params = [{transform_indices = @transform_0, window_bounds = array<i64: 1, 8, 32>}, {transform_indices = @transform_1, window_bounds = array<i64: 1, 64, 96>}, {transform_indices = @transform_2, window_bounds = array<i64: 1, 64, 64>}, {pipeline_mode = #tpu.pipeline_mode<synchronous>, transform_indices = @transform_3, window_bounds = array<i64: 64, 32>}, {pipeline_mode = #tpu.pipeline_mode<synchronous>, transform_indices = @transform_4, window_bounds = array<i64: 1, 32>}, {pipeline_mode = #tpu.pipeline_mode<synchronous>, transform_indices = @transform_5, window_bounds = array<i64: 96, 96>}, {pipeline_mode = #tpu.pipeline_mode<synchronous>, transform_indices = @transform_6, window_bounds = array<i64: 1, 96>}, {pipeline_mode = #tpu.pipeline_mode<synchronous>, transform_indices = @transform_7, window_bounds = array<i64: 2, 32>}, {pipeline_mode = #tpu.pipeline_mode<synchronous>, transform_indices = @transform_8, window_bounds = array<i64: 32, 32>}, {pipeline_mode = #tpu.pipeline_mode<synchronous>, transform_indices = @transform_9, window_bounds = array<i64: 1, 32>}, {pipeline_mode = #tpu.pipeline_mode<synchronous>, transform_indices = @transform_10, window_bounds = array<i64: 32, 32>}, {pipeline_mode = #tpu.pipeline_mode<synchronous>, transform_indices = @transform_11, window_bounds = array<i64: 8, 64>}, {pipeline_mode = #tpu.pipeline_mode<synchronous>, transform_indices = @transform_12, window_bounds = array<i64: 32, 64>}, {pipeline_mode = #tpu.pipeline_mode<synchronous>, transform_indices = @transform_13, window_bounds = array<i64: 1, 64>}, {pipeline_mode = #tpu.pipeline_mode<synchronous>, transform_indices = @transform_14, window_bounds = array<i64: 64, 32>}, {pipeline_mode = #tpu.pipeline_mode<synchronous>, transform_indices = @transform_15, window_bounds = array<i64: 1, 32>}, {transform_indices = @transform_16, window_bounds = array<i64: 1, 8, 32>}]} {
    %0 = arith.index_cast %arg0 : i32 to index
    %1 = memref.load %arg1[%0] : memref<2xi32, #tpu.memory_space<smem>>
    %c0 = arith.constant 0 : index
    %c0_0 = arith.constant 0 : index
    %c0_1 = arith.constant 0 : index
    %2 = vector.load %arg2[%c0, %c0_0, %c0_1] : memref<1x8x32xf32, #tpu.memory_space<vmem>>, vector<1x8x32xf32>
    %3 = vector.shape_cast %2 : vector<1x8x32xf32> to vector<8x32xf32>
    %c0_2 = arith.constant 0 : index
    %c0_3 = arith.constant 0 : index
    %c0_4 = arith.constant 0 : index
    %4 = vector.load %arg3[%c0_2, %c0_3, %c0_4] : memref<1x64x96xf32, #tpu.memory_space<vmem>>, vector<1x64x96xf32>
    %5 = vector.shape_cast %4 : vector<1x64x96xf32> to vector<64x96xf32>
    %c0_5 = arith.constant 0 : index
    %c0_6 = arith.constant 0 : index
    %c0_7 = arith.constant 0 : index
    %6 = vector.load %arg4[%c0_5, %c0_6, %c0_7] : memref<1x64x64xf32, #tpu.memory_space<vmem>>, vector<1x64x64xf32>
    %7 = vector.shape_cast %6 : vector<1x64x64xf32> to vector<64x64xf32>
    %c0_8 = arith.constant 0 : index
    %c0_9 = arith.constant 0 : index
    %8 = vector.load %arg5[%c0_8, %c0_9] : memref<64x32xf32, #tpu.memory_space<vmem>>, vector<64x32xf32>
    %cst = arith.constant dense<0.000000e+00> : vector<64x32xf32>
    %9 = tpu.matmul %7, %8, %cst {dimension_numbers = #tpu.dot_dimension_numbers<[1], [0], [0], [1], [0, 0, 1, 1], [], []>} : vector<64x64xf32>, vector<64x32xf32>, vector<64x32xf32> -> vector<64x32xf32>
    %c0_10 = arith.constant 0 : index
    %c0_11 = arith.constant 0 : index
    %10 = vector.load %arg6[%c0_10, %c0_11] : memref<1x32xf32, #tpu.memory_space<vmem>>, vector<1x32xf32>
    %11 = vector.broadcast %10 : vector<1x32xf32> to vector<64x32xf32>
    %12 = arith.addf %9, %11 : vector<64x32xf32>
    %cst_12 = arith.constant 0.000000e+00 : f32
    %13 = vector.broadcast %cst_12 : f32 to vector<64x32xf32>
    %14 = arith.maximumf %12, %13 : vector<64x32xf32>
    %c0_13 = arith.constant 0 : index
    %c0_14 = arith.constant 0 : index
    %15 = vector.load %arg10[%c0_13, %c0_14] : memref<32x32xf32, #tpu.memory_space<vmem>>, vector<32x32xf32>
    %cst_15 = arith.constant dense<0.000000e+00> : vector<64x32xf32>
    %16 = tpu.matmul %14, %15, %cst_15 {dimension_numbers = #tpu.dot_dimension_numbers<[1], [0], [0], [1], [0, 0, 1, 1], [], []>} : vector<64x32xf32>, vector<32x32xf32>, vector<64x32xf32> -> vector<64x32xf32>
    %c0_16 = arith.constant 0 : index
    %c0_17 = arith.constant 0 : index
    %17 = vector.load %arg11[%c0_16, %c0_17] : memref<1x32xf32, #tpu.memory_space<vmem>>, vector<1x32xf32>
    %18 = vector.broadcast %17 : vector<1x32xf32> to vector<64x32xf32>
    %19 = arith.addf %16, %18 : vector<64x32xf32>
    %c0_18 = arith.constant 0 : index
    %c0_19 = arith.constant 0 : index
    %20 = vector.load %arg7[%c0_18, %c0_19] : memref<96x96xf32, #tpu.memory_space<vmem>>, vector<96x96xf32>
    %cst_20 = arith.constant dense<0.000000e+00> : vector<64x96xf32>
    %21 = tpu.matmul %5, %20, %cst_20 {dimension_numbers = #tpu.dot_dimension_numbers<[1], [0], [0], [1], [0, 0, 1, 1], [], []>} : vector<64x96xf32>, vector<96x96xf32>, vector<64x96xf32> -> vector<64x96xf32>
    %c0_21 = arith.constant 0 : index
    %c0_22 = arith.constant 0 : index
    %22 = vector.load %arg8[%c0_21, %c0_22] : memref<1x96xf32, #tpu.memory_space<vmem>>, vector<1x96xf32>
    %23 = vector.broadcast %22 : vector<1x96xf32> to vector<64x96xf32>
    %24 = arith.addf %21, %23 : vector<64x96xf32>
    %25 = vector.extract_strided_slice %24 {offsets = [0, 0], sizes = [64, 32], strides = [1, 1]} : vector<64x96xf32> to vector<64x32xf32>
    %26 = vector.extract_strided_slice %24 {offsets = [0, 32], sizes = [64, 32], strides = [1, 1]} : vector<64x96xf32> to vector<64x32xf32>
    %27 = vector.extract_strided_slice %24 {offsets = [0, 64], sizes = [64, 32], strides = [1, 1]} : vector<64x96xf32> to vector<64x32xf32>
    %c0_23 = arith.constant 0 : index
    %c0_24 = arith.constant 0 : index
    %28 = vector.load %arg9[%c0_23, %c0_24] : memref<2x32xf32, #tpu.memory_space<vmem>>, vector<1x32xf32>
    %29 = vector.broadcast %28 : vector<1x32xf32> to vector<64x32xf32>
    %30 = arith.addf %25, %29 : vector<64x32xf32>
    %c1 = arith.constant 1 : index
    %c0_25 = arith.constant 0 : index
    %31 = vector.load %arg9[%c1, %c0_25] : memref<2x32xf32, #tpu.memory_space<vmem>>, vector<1x32xf32>
    %32 = vector.broadcast %31 : vector<1x32xf32> to vector<64x32xf32>
    %33 = arith.addf %25, %32 : vector<64x32xf32>
    %34 = arith.mulf %30, %26 : vector<64x32xf32>
    %35 = arith.mulf %33, %19 : vector<64x32xf32>
    %36 = arith.addf %34, %35 : vector<64x32xf32>
    %c0_26 = arith.constant 0 : index
    %c0_27 = arith.constant 0 : index
    %37 = vector.load %arg12[%c0_26, %c0_27] : memref<32x32xf32, #tpu.memory_space<vmem>>, vector<32x32xf32>
    %cst_28 = arith.constant dense<0.000000e+00> : vector<64x32xf32>
    %38 = tpu.matmul %36, %37, %cst_28 {dimension_numbers = #tpu.dot_dimension_numbers<[1], [0], [0], [1], [0, 0, 1, 1], [], []>} : vector<64x32xf32>, vector<32x32xf32>, vector<64x32xf32> -> vector<64x32xf32>
    %39 = tpu.iota {dimensions = array<i32: 0>} : vector<64x32xi32>
    %c7_i32 = arith.constant 7 : i32
    %40 = vector.broadcast %c7_i32 : i32 to vector<64x32xi32>
    %41 = arith.andi %39, %40 : vector<64x32xi32>
    %42 = vector.broadcast %1 : i32 to vector<64x32xi32>
    %43 = arith.cmpi slt, %41, %42 : vector<64x32xi32>
    %cst_29 = arith.constant -9.99999986E+14 : f32
    %44 = vector.broadcast %cst_29 : f32 to vector<64x32xf32>
    %45 = arith.select %43, %38, %44 : vector<64x32xi1>, vector<64x32xf32>
    %46 = math.exp %45 : vector<64x32xf32>
    %c0_30 = arith.constant 0 : index
    %c0_31 = arith.constant 0 : index
    %47 = vector.load %arg13[%c0_30, %c0_31] : memref<8x64xf32, #tpu.memory_space<vmem>>, vector<8x64xf32>
    %48 = arith.mulf %46, %27 : vector<64x32xf32>
    %cst_32 = arith.constant dense<0.000000e+00> : vector<8x32xf32>
    %49 = tpu.matmul %47, %48, %cst_32 {dimension_numbers = #tpu.dot_dimension_numbers<[1], [0], [0], [1], [0, 0, 1, 1], [], []>} : vector<8x64xf32>, vector<64x32xf32>, vector<8x32xf32> -> vector<8x32xf32>
    %c0_33 = arith.constant 0 : index
    %c0_34 = arith.constant 0 : index
    %50 = vector.load %arg13[%c0_33, %c0_34] : memref<8x64xf32, #tpu.memory_space<vmem>>, vector<8x64xf32>
    %cst_35 = arith.constant dense<0.000000e+00> : vector<8x32xf32>
    %51 = tpu.matmul %50, %46, %cst_35 {dimension_numbers = #tpu.dot_dimension_numbers<[1], [0], [0], [1], [0, 0, 1, 1], [], []>} : vector<8x64xf32>, vector<64x32xf32>, vector<8x32xf32> -> vector<8x32xf32>
    %cst_36 = arith.constant 1.000000e-30 : f32
    %52 = vector.broadcast %cst_36 : f32 to vector<8x32xf32>
    %53 = arith.maximumf %51, %52 : vector<8x32xf32>
    %54 = tpu.reciprocal %53 {approx = true} : vector<8x32xf32> -> vector<8x32xf32>
    %55 = arith.mulf %49, %54 : vector<8x32xf32>
    %56 = arith.addf %3, %55 : vector<8x32xf32>
    %cst_37 = arith.constant dense<0.000000e+00> : vector<8xf32>
    %57 = vector.multi_reduction <add>, %56, %cst_37 [1] : vector<8x32xf32> to vector<8xf32>
    %58 = vector.shape_cast %57 : vector<8xf32> to vector<8x1xf32>
    %cst_38 = arith.constant 3.200000e+01 : f32
    %59 = vector.broadcast %cst_38 : f32 to vector<8x1xf32>
    %60 = arith.divf %58, %59 : vector<8x1xf32>
    %61 = vector.broadcast %60 : vector<8x1xf32> to vector<8x32xf32>
    %62 = arith.subf %56, %61 : vector<8x32xf32>
    %63 = arith.mulf %62, %62 : vector<8x32xf32>
    %cst_39 = arith.constant dense<0.000000e+00> : vector<8xf32>
    %64 = vector.multi_reduction <add>, %63, %cst_39 [1] : vector<8x32xf32> to vector<8xf32>
    %65 = vector.shape_cast %64 : vector<8xf32> to vector<8x1xf32>
    %cst_40 = arith.constant 3.200000e+01 : f32
    %66 = vector.broadcast %cst_40 : f32 to vector<8x1xf32>
    %67 = arith.divf %65, %66 : vector<8x1xf32>
    %68 = vector.broadcast %60 : vector<8x1xf32> to vector<8x32xf32>
    %69 = arith.subf %56, %68 : vector<8x32xf32>
    %cst_41 = arith.constant 9.99999974E-6 : f32
    %70 = vector.broadcast %cst_41 : f32 to vector<8x1xf32>
    %71 = arith.addf %67, %70 : vector<8x1xf32>
    %72 = math.rsqrt %71 : vector<8x1xf32>
    %73 = vector.broadcast %72 : vector<8x1xf32> to vector<8x32xf32>
    %74 = arith.mulf %69, %73 : vector<8x32xf32>
    %c0_42 = arith.constant 0 : index
    %c0_43 = arith.constant 0 : index
    %75 = vector.load %arg14[%c0_42, %c0_43] : memref<32x64xf32, #tpu.memory_space<vmem>>, vector<32x64xf32>
    %cst_44 = arith.constant dense<0.000000e+00> : vector<8x64xf32>
    %76 = tpu.matmul %74, %75, %cst_44 {dimension_numbers = #tpu.dot_dimension_numbers<[1], [0], [0], [1], [0, 0, 1, 1], [], []>} : vector<8x32xf32>, vector<32x64xf32>, vector<8x64xf32> -> vector<8x64xf32>
    %c0_45 = arith.constant 0 : index
    %c0_46 = arith.constant 0 : index
    %77 = vector.load %arg15[%c0_45, %c0_46] : memref<1x64xf32, #tpu.memory_space<vmem>>, vector<1x64xf32>
    %78 = vector.broadcast %77 : vector<1x64xf32> to vector<8x64xf32>
    %79 = arith.addf %76, %78 : vector<8x64xf32>
    %cst_47 = arith.constant 0.000000e+00 : f32
    %80 = vector.broadcast %cst_47 : f32 to vector<8x64xf32>
    %81 = arith.maximumf %79, %80 : vector<8x64xf32>
    %c0_48 = arith.constant 0 : index
    %c0_49 = arith.constant 0 : index
    %82 = vector.load %arg16[%c0_48, %c0_49] : memref<64x32xf32, #tpu.memory_space<vmem>>, vector<64x32xf32>
    %cst_50 = arith.constant dense<0.000000e+00> : vector<8x32xf32>
    %83 = tpu.matmul %81, %82, %cst_50 {dimension_numbers = #tpu.dot_dimension_numbers<[1], [0], [0], [1], [0, 0, 1, 1], [], []>} : vector<8x64xf32>, vector<64x32xf32>, vector<8x32xf32> -> vector<8x32xf32>
    %c0_51 = arith.constant 0 : index
    %c0_52 = arith.constant 0 : index
    %84 = vector.load %arg17[%c0_51, %c0_52] : memref<1x32xf32, #tpu.memory_space<vmem>>, vector<1x32xf32>
    %85 = vector.broadcast %84 : vector<1x32xf32> to vector<8x32xf32>
    %86 = arith.addf %83, %85 : vector<8x32xf32>
    %cst_53 = arith.constant 0.000000e+00 : f32
    %87 = vector.broadcast %cst_53 : f32 to vector<8x32xf32>
    %88 = arith.maximumf %86, %87 : vector<8x32xf32>
    %89 = arith.addf %88, %74 : vector<8x32xf32>
    %cst_54 = arith.constant dense<0.000000e+00> : vector<8xf32>
    %90 = vector.multi_reduction <add>, %89, %cst_54 [1] : vector<8x32xf32> to vector<8xf32>
    %91 = vector.shape_cast %90 : vector<8xf32> to vector<8x1xf32>
    %cst_55 = arith.constant 3.200000e+01 : f32
    %92 = vector.broadcast %cst_55 : f32 to vector<8x1xf32>
    %93 = arith.divf %91, %92 : vector<8x1xf32>
    %94 = vector.broadcast %93 : vector<8x1xf32> to vector<8x32xf32>
    %95 = arith.subf %89, %94 : vector<8x32xf32>
    %96 = arith.mulf %95, %95 : vector<8x32xf32>
    %cst_56 = arith.constant dense<0.000000e+00> : vector<8xf32>
    %97 = vector.multi_reduction <add>, %96, %cst_56 [1] : vector<8x32xf32> to vector<8xf32>
    %98 = vector.shape_cast %97 : vector<8xf32> to vector<8x1xf32>
    %cst_57 = arith.constant 3.200000e+01 : f32
    %99 = vector.broadcast %cst_57 : f32 to vector<8x1xf32>
    %100 = arith.divf %98, %99 : vector<8x1xf32>
    %101 = vector.broadcast %93 : vector<8x1xf32> to vector<8x32xf32>
    %102 = arith.subf %89, %101 : vector<8x32xf32>
    %cst_58 = arith.constant 9.99999974E-6 : f32
    %103 = vector.broadcast %cst_58 : f32 to vector<8x1xf32>
    %104 = arith.addf %100, %103 : vector<8x1xf32>
    %105 = math.rsqrt %104 : vector<8x1xf32>
    %106 = vector.broadcast %105 : vector<8x1xf32> to vector<8x32xf32>
    %107 = arith.mulf %102, %106 : vector<8x32xf32>
    %c0_59 = arith.constant 0 : index
    %c0_60 = arith.constant 0 : index
    %c0_61 = arith.constant 0 : index
    %108 = vector.load %arg18[%c0_59, %c0_60, %c0_61] : memref<1x8x32xf32, #tpu.memory_space<vmem>>, vector<1x8x32xf32>
    %109 = vector.shape_cast %108 : vector<1x8x32xf32> to vector<8x32xf32>
    %110 = vector.shape_cast %107 : vector<8x32xf32> to vector<1x8x32xf32>
    tpu.vector_store %arg18[%c0_59, %c0_60, %c0_61], %110 {strides = array<i32>} : memref<1x8x32xf32, #tpu.memory_space<vmem>>, vector<1x8x32xf32>,
    return
  }
  func.func @transform_0(%arg0: i32, %arg1: memref<2xi32, #tpu.memory_space<smem>>) -> (i32, i32, i32) {
    %c0_i32 = arith.constant 0 : i32
    %c0_i32_0 = arith.constant 0 : i32
    %c0_i32_1 = arith.constant 0 : i32
    return %arg0, %c0_i32, %c0_i32_0 : i32, i32, i32
  }
  func.func @transform_1(%arg0: i32, %arg1: memref<2xi32, #tpu.memory_space<smem>>) -> (i32, i32, i32) {
    %c0_i32 = arith.constant 0 : i32
    %c0_i32_0 = arith.constant 0 : i32
    %c0_i32_1 = arith.constant 0 : i32
    return %arg0, %c0_i32, %c0_i32_0 : i32, i32, i32
  }
  func.func @transform_2(%arg0: i32, %arg1: memref<2xi32, #tpu.memory_space<smem>>) -> (i32, i32, i32) {
    %c0_i32 = arith.constant 0 : i32
    %c0_i32_0 = arith.constant 0 : i32
    %c0_i32_1 = arith.constant 0 : i32
    return %arg0, %c0_i32, %c0_i32_0 : i32, i32, i32
  }
  func.func @transform_3(%arg0: i32, %arg1: memref<2xi32, #tpu.memory_space<smem>>) -> (i32, i32) {
    %c0_i32 = arith.constant 0 : i32
    %c0_i32_0 = arith.constant 0 : i32
    %c0_i32_1 = arith.constant 0 : i32
    return %c0_i32, %c0_i32_0 : i32, i32
  }
  func.func @transform_4(%arg0: i32, %arg1: memref<2xi32, #tpu.memory_space<smem>>) -> (i32, i32) {
    %c0_i32 = arith.constant 0 : i32
    %c0_i32_0 = arith.constant 0 : i32
    %c0_i32_1 = arith.constant 0 : i32
    return %c0_i32, %c0_i32_0 : i32, i32
  }
  func.func @transform_5(%arg0: i32, %arg1: memref<2xi32, #tpu.memory_space<smem>>) -> (i32, i32) {
    %c0_i32 = arith.constant 0 : i32
    %c0_i32_0 = arith.constant 0 : i32
    %c0_i32_1 = arith.constant 0 : i32
    return %c0_i32, %c0_i32_0 : i32, i32
  }
  func.func @transform_6(%arg0: i32, %arg1: memref<2xi32, #tpu.memory_space<smem>>) -> (i32, i32) {
    %c0_i32 = arith.constant 0 : i32
    %c0_i32_0 = arith.constant 0 : i32
    %c0_i32_1 = arith.constant 0 : i32
    return %c0_i32, %c0_i32_0 : i32, i32
  }
  func.func @transform_7(%arg0: i32, %arg1: memref<2xi32, #tpu.memory_space<smem>>) -> (i32, i32) {
    %c0_i32 = arith.constant 0 : i32
    %c0_i32_0 = arith.constant 0 : i32
    %c0_i32_1 = arith.constant 0 : i32
    return %c0_i32, %c0_i32_0 : i32, i32
  }
  func.func @transform_8(%arg0: i32, %arg1: memref<2xi32, #tpu.memory_space<smem>>) -> (i32, i32) {
    %c0_i32 = arith.constant 0 : i32
    %c0_i32_0 = arith.constant 0 : i32
    %c0_i32_1 = arith.constant 0 : i32
    return %c0_i32, %c0_i32_0 : i32, i32
  }
  func.func @transform_9(%arg0: i32, %arg1: memref<2xi32, #tpu.memory_space<smem>>) -> (i32, i32) {
    %c0_i32 = arith.constant 0 : i32
    %c0_i32_0 = arith.constant 0 : i32
    %c0_i32_1 = arith.constant 0 : i32
    return %c0_i32, %c0_i32_0 : i32, i32
  }
  func.func @transform_10(%arg0: i32, %arg1: memref<2xi32, #tpu.memory_space<smem>>) -> (i32, i32) {
    %c0_i32 = arith.constant 0 : i32
    %c0_i32_0 = arith.constant 0 : i32
    %c0_i32_1 = arith.constant 0 : i32
    return %c0_i32, %c0_i32_0 : i32, i32
  }
  func.func @transform_11(%arg0: i32, %arg1: memref<2xi32, #tpu.memory_space<smem>>) -> (i32, i32) {
    %c0_i32 = arith.constant 0 : i32
    %c0_i32_0 = arith.constant 0 : i32
    %c0_i32_1 = arith.constant 0 : i32
    return %c0_i32, %c0_i32_0 : i32, i32
  }
  func.func @transform_12(%arg0: i32, %arg1: memref<2xi32, #tpu.memory_space<smem>>) -> (i32, i32) {
    %c0_i32 = arith.constant 0 : i32
    %c0_i32_0 = arith.constant 0 : i32
    %c0_i32_1 = arith.constant 0 : i32
    return %c0_i32, %c0_i32_0 : i32, i32
  }
  func.func @transform_13(%arg0: i32, %arg1: memref<2xi32, #tpu.memory_space<smem>>) -> (i32, i32) {
    %c0_i32 = arith.constant 0 : i32
    %c0_i32_0 = arith.constant 0 : i32
    %c0_i32_1 = arith.constant 0 : i32
    return %c0_i32, %c0_i32_0 : i32, i32
  }
  func.func @transform_14(%arg0: i32, %arg1: memref<2xi32, #tpu.memory_space<smem>>) -> (i32, i32) {
    %c0_i32 = arith.constant 0 : i32
    %c0_i32_0 = arith.constant 0 : i32
    %c0_i32_1 = arith.constant 0 : i32
    return %c0_i32, %c0_i32_0 : i32, i32
  }
  func.func @transform_15(%arg0: i32, %arg1: memref<2xi32, #tpu.memory_space<smem>>) -> (i32, i32) {
    %c0_i32 = arith.constant 0 : i32
    %c0_i32_0 = arith.constant 0 : i32
    %c0_i32_1 = arith.constant 0 : i32
    return %c0_i32, %c0_i32_0 : i32, i32
  }
  func.func @transform_16(%arg0: i32, %arg1: memref<2xi32, #tpu.memory_space<smem>>) -> (i32, i32, i32) {
    %c0_i32 = arith.constant 0 : i32
    %c0_i32_0 = arith.constant 0 : i32
    %c0_i32_1 = arith.constant 0 : i32
    return %arg0, %c0_i32, %c0_i32_0 : i32, i32, i32
  }
}

</mosaic_0001>

<llo_original>
// kernel: bert_lattice_forward.1
$region0: #{bert_lattice_forward.1}
  #allocation0 [shape = 'u32[]', space=smem, size = 0x4, offset = 0x4, fixed_abs, tag = 'smem constant byte address 0x4 - core index']
  #allocation1 [shape = 'u32[144,128]{1,0:T(1,128)}', space=vmem, size = 0x12000, scoped, tag = 'internal scratch']
  #allocation2 [shape = 's32[1]{0}', space=sflag, size = 0x4, scoped, tag = 'scoped memory for bert_lattice_forward.1']
  #allocation3 [shape = 'u8[512]{0}', space=smem, size = 0x200, scoped, tag = 'prefetched SMEM operand 0']
  %s0 = inlined_call_operand.vmem [shape: s32[2], index: 0, kind: input, shape index: {}]
  %s1 = inlined_call_operand.vmem [shape: f32[2,8,32], index: 1, kind: input, shape index: {}]
  %s2 = inlined_call_operand.vmem [shape: f32[2,64,96], index: 2, kind: input, shape index: {}]
  %s3 = inlined_call_operand.vmem [shape: f32[2,64,64], index: 3, kind: input, shape index: {}]
  %s4 = inlined_call_operand.vmem [shape: f32[64,32], index: 4, kind: input, shape index: {}]
  %s5 = inlined_call_operand.vmem [shape: f32[1,32], index: 5, kind: input, shape index: {}]
  %s6 = inlined_call_operand.vmem [shape: f32[96,96], index: 6, kind: input, shape index: {}]
  %s7 = inlined_call_operand.vmem [shape: f32[1,96], index: 7, kind: input, shape index: {}]
  %s8 = inlined_call_operand.vmem [shape: f32[2,32], index: 8, kind: input, shape index: {}]
  %s9 = inlined_call_operand.vmem [shape: f32[32,32], index: 9, kind: input, shape index: {}]
  %s10 = inlined_call_operand.vmem [shape: f32[1,32], index: 10, kind: input, shape index: {}]
  %s11 = inlined_call_operand.vmem [shape: f32[32,32], index: 11, kind: input, shape index: {}]
  %s12 = inlined_call_operand.vmem [shape: f32[8,64], index: 12, kind: input, shape index: {}]
  %s13 = inlined_call_operand.vmem [shape: f32[32,64], index: 13, kind: input, shape index: {}]
  %s14 = inlined_call_operand.vmem [shape: f32[1,64], index: 14, kind: input, shape index: {}]
  %s15 = inlined_call_operand.vmem [shape: f32[64,32], index: 15, kind: input, shape index: {}]
  %s16 = inlined_call_operand.vmem [shape: f32[1,32], index: 16, kind: input, shape index: {}]
  %s17 = inlined_call_operand.hbm [shape: f32[2,8,32], index: 17, kind: output, shape index: {}]
  %s18 = sld [smem:[#allocation0]]
  $region97: #{bert_lattice_forward.1} parent=0
    _
  %s20 = ssub.s32 1, %s18
  %s21 = scalar_select 0, %s20, %s18
  %s22 = sshll.u32 %s0, 4
  %s23 = int_to_ptr.vmem [resolvable:$true] %s22
  %25 = dma.vmem_to_smem %s23, 16, [#allocation3], [#allocation2]
  %26 = dma.done [#allocation2], 16
  %27 = sfence
  $region1: #{bert_lattice_forward.1} parent=0
    #allocation4 [shape = 'u8[8192]{0}', space=vmem, size = 0x2000, scoped, tag = 'output window, operand 0']
    #allocation5 [shape = 's32[2]{0}', space=sflag, size = 0x8, scoped, tag = 'scoped memory for bert_lattice_forward.1']
    %28 = vsyncpa [#allocation5], 0
    %s29 = scalar_lea.sflag [#allocation5], 1
    %30 = vsyncpa %s29, 0
    loop: start=0, step=1, limit=4
    $region2: #{bert_lattice_forward.1} parent=1 // loop_pre_header
      _
    $region3: #{bert_lattice_forward.1} parent=1 // loop_header
      %s32 = sphi 0, %s36
      %p33 = scmp.ge.s32.totalorder %s32, 4
      %s42 = sphi 0, %s44
      %s45 = sphi 0, %s42
      %s46 = sphi 0, %s45
      %s62 = sphi 0, %s46
      %s68 = sphi 0, %s70
      %s71 = sphi 0, %s68
      %s72 = sphi 0, %s71
      %s88 = sphi 0, %s72
      %s94 = sphi 0, %s96
      %s97 = sphi 0, %s94
      %s98 = sphi 0, %s97
      %s114 = sphi 0, %s98
      %s118 = sphi 0, %s118
      %s120 = sphi 0, %s118
      %s121 = sphi 0, %s120
      %s135 = sphi 0, %s121
      %s139 = sphi 0, %s139
      %s141 = sphi 0, %s139
      %s142 = sphi 0, %s141
      %s156 = sphi 0, %s142
      %s160 = sphi 0, %s160
      %s162 = sphi 0, %s160
      %s163 = sphi 0, %s162
      %s177 = sphi 0, %s163
      %s181 = sphi 0, %s181
      %s183 = sphi 0, %s181
      %s184 = sphi 0, %s183
      %s198 = sphi 0, %s184
      %s202 = sphi 0, %s202
      %s204 = sphi 0, %s202
      %s205 = sphi 0, %s204
      %s219 = sphi 0, %s205
      %s223 = sphi 0, %s223
      %s225 = sphi 0, %s223
      %s226 = sphi 0, %s225
      %s240 = sphi 0, %s226
      %s244 = sphi 0, %s244
      %s246 = sphi 0, %s244
      %s247 = sphi 0, %s246
      %s261 = sphi 0, %s247
      %s265 = sphi 0, %s265
      %s267 = sphi 0, %s265
      %s268 = sphi 0, %s267
      %s282 = sphi 0, %s268
      %s286 = sphi 0, %s286
      %s288 = sphi 0, %s286
      %s289 = sphi 0, %s288
      %s303 = sphi 0, %s289
      %s307 = sphi 0, %s307
      %s309 = sphi 0, %s307
      %s310 = sphi 0, %s309
      %s324 = sphi 0, %s310
      %s328 = sphi 0, %s328
      %s330 = sphi 0, %s328
      %s331 = sphi 0, %s330
      %s345 = sphi 0, %s331
      %s349 = sphi 0, %s349
      %s351 = sphi 0, %s349
      %s352 = sphi 0, %s351
      %s366 = sphi 0, %s352
      %s370 = sphi 0, %s370
      %s372 = sphi 0, %s370
      %s373 = sphi 0, %s372
      %s387 = sphi 0, %s373
      %s393 = sphi 0, %s395
      %s396 = sphi 0, %s393
      %s397 = sphi 0, %s396
      %s413 = sphi 0, %s397
    $region4: #{bert_lattice_forward.1} parent=1 // loop_header_branch
      %35 = sbr.rel (%p33) target = $region8
    $region5: #{bert_lattice_forward.1} parent=1 // loop_body
      %s37 = ssub.s32 %s32, 1
      %s38 = ssub.s32 %s32, 2
      %s39 = sadd.s32 %s32, 1
      %s40 = ssub.s32 %s32, %s39
      %p41 = scmp.eq.s32.totalorder %s40, 0
      %s43 = sadd.s32 %s42, 1
      %s44 = scalar_select %p41, %s42, %s43
      %p47 = pneg %p41
      %p48 = scmp.eq.s32.totalorder %s32, 1
      %p49 = por %p47, %p48
      %p50 = scmp.ne.s32.totalorder %s42, %s45
      %p51 = scmp.eq.s32.totalorder %s32, 0
      %p52 = por %p50, %p51
      %p53 = scmp.ne.s32.totalorder %s42, %s45
      %p54 = scmp.eq.s32.totalorder %s37, 1
      %p55 = por %p53, %p54
      %p56 = scmp.ne.s32.totalorder %s45, %s46
      %p57 = scmp.eq.s32.totalorder %s37, 0
      %p58 = por %p56, %p57
      %p59 = scmp.ne.s32.totalorder %s45, %s46
      %p60 = scmp.eq.s32.totalorder %s38, 1
      %p61 = por %p59, %p60
      %p63 = scmp.ne.s32.totalorder %s46, %s62
      %p64 = scmp.eq.s32.totalorder %s38, 0
      %p65 = por %p63, %p64
      %s66 = ssub.s32 %s32, %s39
      %p67 = scmp.eq.s32.totalorder %s66, 0
      %s69 = sadd.s32 %s68, 1
      %s70 = scalar_select %p67, %s68, %s69
      %p73 = pneg %p67
      %p74 = scmp.eq.s32.totalorder %s32, 1
      %p75 = por %p73, %p74
      %p76 = scmp.ne.s32.totalorder %s68, %s71
      %p77 = scmp.eq.s32.totalorder %s32, 0
      %p78 = por %p76, %p77
      %p79 = scmp.ne.s32.totalorder %s68, %s71
      %p80 = scmp.eq.s32.totalorder %s37, 1
      %p81 = por %p79, %p80
      %p82 = scmp.ne.s32.totalorder %s71, %s72
      %p83 = scmp.eq.s32.totalorder %s37, 0
      %p84 = por %p82, %p83
      %p85 = scmp.ne.s32.totalorder %s71, %s72
      %p86 = scmp.eq.s32.totalorder %s38, 1
      %p87 = por %p85, %p86
      %p89 = scmp.ne.s32.totalorder %s72, %s88
      %p90 = scmp.eq.s32.totalorder %s38, 0
      %p91 = por %p89, %p90
      %s92 = ssub.s32 %s32, %s39
      %p93 = scmp.eq.s32.totalorder %s92, 0
      %s95 = sadd.s32 %s94, 1
      %s96 = scalar_select %p93, %s94, %s95
      %p99 = pneg %p93
      %p100 = scmp.eq.s32.totalorder %s32, 1
      %p101 = por %p99, %p100
      %p102 = scmp.ne.s32.totalorder %s94, %s97
      %p103 = scmp.eq.s32.totalorder %s32, 0
      %p104 = por %p102, %p103
      %p105 = scmp.ne.s32.totalorder %s94, %s97
      %p106 = scmp.eq.s32.totalorder %s37, 1
      %p107 = por %p105, %p106
      %p108 = scmp.ne.s32.totalorder %s97, %s98
      %p109 = scmp.eq.s32.totalorder %s37, 0
      %p110 = por %p108, %p109
      %p111 = scmp.ne.s32.totalorder %s97, %s98
      %p112 = scmp.eq.s32.totalorder %s38, 1
      %p113 = por %p111, %p112
      %p115 = scmp.ne.s32.totalorder %s98, %s114
      %p116 = scmp.eq.s32.totalorder %s38, 0
      %p117 = por %p115, %p116
      %s119 = sadd.s32 %s118, 1
      %p122 = scmp.eq.s32.totalorder %s32, 1
      %p123 = scmp.ne.s32.totalorder %s118, %s120
      %p124 = scmp.eq.s32.totalorder %s32, 0
      %p125 = por %p123, %p124
      %p126 = scmp.ne.s32.totalorder %s118, %s120
      %p127 = scmp.eq.s32.totalorder %s37, 1
      %p128 = por %p126, %p127
      %p129 = scmp.ne.s32.totalorder %s120, %s121
      %p130 = scmp.eq.s32.totalorder %s37, 0
      %p131 = por %p129, %p130
      %p132 = scmp.ne.s32.totalorder %s120, %s121
      %p133 = scmp.eq.s32.totalorder %s38, 1
      %p134 = por %p132, %p133
      %p136 = scmp.ne.s32.totalorder %s121, %s135
      %p137 = scmp.eq.s32.totalorder %s38, 0
      %p138 = por %p136, %p137
      %s140 = sadd.s32 %s139, 1
      %p143 = scmp.eq.s32.totalorder %s32, 1
      %p144 = scmp.ne.s32.totalorder %s139, %s141
      %p145 = scmp.eq.s32.totalorder %s32, 0
      %p146 = por %p144, %p145
      %p147 = scmp.ne.s32.totalorder %s139, %s141
      %p148 = scmp.eq.s32.totalorder %s37, 1
      %p149 = por %p147, %p148
      %p150 = scmp.ne.s32.totalorder %s141, %s142
      %p151 = scmp.eq.s32.totalorder %s37, 0
      %p152 = por %p150, %p151
      %p153 = scmp.ne.s32.totalorder %s141, %s142
      %p154 = scmp.eq.s32.totalorder %s38, 1
      %p155 = por %p153, %p154
      %p157 = scmp.ne.s32.totalorder %s142, %s156
      %p158 = scmp.eq.s32.totalorder %s38, 0
      %p159 = por %p157, %p158
      %s161 = sadd.s32 %s160, 1
      %p164 = scmp.eq.s32.totalorder %s32, 1
      %p165 = scmp.ne.s32.totalorder %s160, %s162
      %p166 = scmp.eq.s32.totalorder %s32, 0
      %p167 = por %p165, %p166
      %p168 = scmp.ne.s32.totalorder %s160, %s162
      %p169 = scmp.eq.s32.totalorder %s37, 1
      %p170 = por %p168, %p169
      %p171 = scmp.ne.s32.totalorder %s162, %s163
      %p172 = scmp.eq.s32.totalorder %s37, 0
      %p173 = por %p171, %p172
      %p174 = scmp.ne.s32.totalorder %s162, %s163
      %p175 = scmp.eq.s32.totalorder %s38, 1
      %p176 = por %p174, %p175
      %p178 = scmp.ne.s32.totalorder %s163, %s177
      %p179 = scmp.eq.s32.totalorder %s38, 0
      %p180 = por %p178, %p179
      %s182 = sadd.s32 %s181, 1
      %p185 = scmp.eq.s32.totalorder %s32, 1
      %p186 = scmp.ne.s32.totalorder %s181, %s183
      %p187 = scmp.eq.s32.totalorder %s32, 0
      %p188 = por %p186, %p187
      %p189 = scmp.ne.s32.totalorder %s181, %s183
      %p190 = scmp.eq.s32.totalorder %s37, 1
      %p191 = por %p189, %p190
      %p192 = scmp.ne.s32.totalorder %s183, %s184
      %p193 = scmp.eq.s32.totalorder %s37, 0
      %p194 = por %p192, %p193
      %p195 = scmp.ne.s32.totalorder %s183, %s184
      %p196 = scmp.eq.s32.totalorder %s38, 1
      %p197 = por %p195, %p196
      %p199 = scmp.ne.s32.totalorder %s184, %s198
      %p200 = scmp.eq.s32.totalorder %s38, 0
      %p201 = por %p199, %p200
      %s203 = sadd.s32 %s202, 1
      %p206 = scmp.eq.s32.totalorder %s32, 1
      %p207 = scmp.ne.s32.totalorder %s202, %s204
      %p208 = scmp.eq.s32.totalorder %s32, 0
      %p209 = por %p207, %p208
      %p210 = scmp.ne.s32.totalorder %s202, %s204
      %p211 = scmp.eq.s32.totalorder %s37, 1
      %p212 = por %p210, %p211
      %p213 = scmp.ne.s32.totalorder %s204, %s205
      %p214 = scmp.eq.s32.totalorder %s37, 0
      %p215 = por %p213, %p214
      %p216 = scmp.ne.s32.totalorder %s204, %s205
      %p217 = scmp.eq.s32.totalorder %s38, 1
      %p218 = por %p216, %p217
      %p220 = scmp.ne.s32.totalorder %s205, %s219
      %p221 = scmp.eq.s32.totalorder %s38, 0
      %p222 = por %p220, %p221
      %s224 = sadd.s32 %s223, 1
      %p227 = scmp.eq.s32.totalorder %s32, 1
      %p228 = scmp.ne.s32.totalorder %s223, %s225
      %p229 = scmp.eq.s32.totalorder %s32, 0
      %p230 = por %p228, %p229
      %p231 = scmp.ne.s32.totalorder %s223, %s225
      %p232 = scmp.eq.s32.totalorder %s37, 1
      %p233 = por %p231, %p232
      %p234 = scmp.ne.s32.totalorder %s225, %s226
      %p235 = scmp.eq.s32.totalorder %s37, 0
      %p236 = por %p234, %p235
      %p237 = scmp.ne.s32.totalorder %s225, %s226
      %p238 = scmp.eq.s32.totalorder %s38, 1
      %p239 = por %p237, %p238
      %p241 = scmp.ne.s32.totalorder %s226, %s240
      %p242 = scmp.eq.s32.totalorder %s38, 0
      %p243 = por %p241, %p242
      %s245 = sadd.s32 %s244, 1
      %p248 = scmp.eq.s32.totalorder %s32, 1
      %p249 = scmp.ne.s32.totalorder %s244, %s246
      %p250 = scmp.eq.s32.totalorder %s32, 0
      %p251 = por %p249, %p250
      %p252 = scmp.ne.s32.totalorder %s244, %s246
      %p253 = scmp.eq.s32.totalorder %s37, 1
      %p254 = por %p252, %p253
      %p255 = scmp.ne.s32.totalorder %s246, %s247
      %p256 = scmp.eq.s32.totalorder %s37, 0
      %p257 = por %p255, %p256
      %p258 = scmp.ne.s32.totalorder %s246, %s247
      %p259 = scmp.eq.s32.totalorder %s38, 1
      %p260 = por %p258, %p259
      %p262 = scmp.ne.s32.totalorder %s247, %s261
      %p263 = scmp.eq.s32.totalorder %s38, 0
      %p264 = por %p262, %p263
      %s266 = sadd.s32 %s265, 1
      %p269 = scmp.eq.s32.totalorder %s32, 1
      %p270 = scmp.ne.s32.totalorder %s265, %s267
      %p271 = scmp.eq.s32.totalorder %s32, 0
      %p272 = por %p270, %p271
      %p273 = scmp.ne.s32.totalorder %s265, %s267
      %p274 = scmp.eq.s32.totalorder %s37, 1
      %p275 = por %p273, %p274
      %p276 = scmp.ne.s32.totalorder %s267, %s268
      %p277 = scmp.eq.s32.totalorder %s37, 0
      %p278 = por %p276, %p277
      %p279 = scmp.ne.s32.totalorder %s267, %s268
      %p280 = scmp.eq.s32.totalorder %s38, 1
      %p281 = por %p279, %p280
      %p283 = scmp.ne.s32.totalorder %s268, %s282
      %p284 = scmp.eq.s32.totalorder %s38, 0
      %p285 = por %p283, %p284
      %s287 = sadd.s32 %s286, 1
      %p290 = scmp.eq.s32.totalorder %s32, 1
      %p291 = scmp.ne.s32.totalorder %s286, %s288
      %p292 = scmp.eq.s32.totalorder %s32, 0
      %p293 = por %p291, %p292
      %p294 = scmp.ne.s32.totalorder %s286, %s288
      %p295 = scmp.eq.s32.totalorder %s37, 1
      %p296 = por %p294, %p295
      %p297 = scmp.ne.s32.totalorder %s288, %s289
      %p298 = scmp.eq.s32.totalorder %s37, 0
      %p299 = por %p297, %p298
      %p300 = scmp.ne.s32.totalorder %s288, %s289
      %p301 = scmp.eq.s32.totalorder %s38, 1
      %p302 = por %p300, %p301
      %p304 = scmp.ne.s32.totalorder %s289, %s303
      %p305 = scmp.eq.s32.totalorder %s38, 0
      %p306 = por %p304, %p305
      %s308 = sadd.s32 %s307, 1
      %p311 = scmp.eq.s32.totalorder %s32, 1
      %p312 = scmp.ne.s32.totalorder %s307, %s309
      %p313 = scmp.eq.s32.totalorder %s32, 0
      %p314 = por %p312, %p313
      %p315 = scmp.ne.s32.totalorder %s307, %s309
      %p316 = scmp.eq.s32.totalorder %s37, 1
      %p317 = por %p315, %p316
      %p318 = scmp.ne.s32.totalorder %s309, %s310
      %p319 = scmp.eq.s32.totalorder %s37, 0
      %p320 = por %p318, %p319
      %p321 = scmp.ne.s32.totalorder %s309, %s310
      %p322 = scmp.eq.s32.totalorder %s38, 1
      %p323 = por %p321, %p322
      %p325 = scmp.ne.s32.totalorder %s310, %s324
      %p326 = scmp.eq.s32.totalorder %s38, 0
      %p327 = por %p325, %p326
      %s329 = sadd.s32 %s328, 1
      %p332 = scmp.eq.s32.totalorder %s32, 1
      %p333 = scmp.ne.s32.totalorder %s328, %s330
      %p334 = scmp.eq.s32.totalorder %s32, 0
      %p335 = por %p333, %p334
      %p336 = scmp.ne.s32.totalorder %s328, %s330
      %p337 = scmp.eq.s32.totalorder %s37, 1
      %p338 = por %p336, %p337
      %p339 = scmp.ne.s32.totalorder %s330, %s331
      %p340 = scmp.eq.s32.totalorder %s37, 0
      %p341 = por %p339, %p340
      %p342 = scmp.ne.s32.totalorder %s330, %s331
      %p343 = scmp.eq.s32.totalorder %s38, 1
      %p344 = por %p342, %p343
      %p346 = scmp.ne.s32.totalorder %s331, %s345
      %p347 = scmp.eq.s32.totalorder %s38, 0
      %p348 = por %p346, %p347
      %s350 = sadd.s32 %s349, 1
      %p353 = scmp.eq.s32.totalorder %s32, 1
      %p354 = scmp.ne.s32.totalorder %s349, %s351
      %p355 = scmp.eq.s32.totalorder %s32, 0
      %p356 = por %p354, %p355
      %p357 = scmp.ne.s32.totalorder %s349, %s351
      %p358 = scmp.eq.s32.totalorder %s37, 1
      %p359 = por %p357, %p358
      %p360 = scmp.ne.s32.totalorder %s351, %s352
      %p361 = scmp.eq.s32.totalorder %s37, 0
      %p362 = por %p360, %p361
      %p363 = scmp.ne.s32.totalorder %s351, %s352
      %p364 = scmp.eq.s32.totalorder %s38, 1
      %p365 = por %p363, %p364
      %p367 = scmp.ne.s32.totalorder %s352, %s366
      %p368 = scmp.eq.s32.totalorder %s38, 0
      %p369 = por %p367, %p368
      %s371 = sadd.s32 %s370, 1
      %p374 = scmp.eq.s32.totalorder %s32, 1
      %p375 = scmp.ne.s32.totalorder %s370, %s372
      %p376 = scmp.eq.s32.totalorder %s32, 0
      %p377 = por %p375, %p376
      %p378 = scmp.ne.s32.totalorder %s370, %s372
      %p379 = scmp.eq.s32.totalorder %s37, 1
      %p380 = por %p378, %p379
      %p381 = scmp.ne.s32.totalorder %s372, %s373
      %p382 = scmp.eq.s32.totalorder %s37, 0
      %p383 = por %p381, %p382
      %p384 = scmp.ne.s32.totalorder %s372, %s373
      %p385 = scmp.eq.s32.totalorder %s38, 1
      %p386 = por %p384, %p385
      %p388 = scmp.ne.s32.totalorder %s373, %s387
      %p389 = scmp.eq.s32.totalorder %s38, 0
      %p390 = por %p388, %p389
      %s391 = ssub.s32 %s32, %s39
      %p392 = scmp.eq.s32.totalorder %s391, 0
      %s394 = sadd.s32 %s393, 1
      %s395 = scalar_select %p392, %s393, %s394
      %p398 = pneg %p392
      %p399 = scmp.eq.s32.totalorder %s32, 1
      %p400 = por %p398, %p399
      %p401 = scmp.ne.s32.totalorder %s393, %s396
      %p402 = scmp.eq.s32.totalorder %s32, 0
      %p403 = por %p401, %p402
      %p404 = scmp.ne.s32.totalorder %s393, %s396
      %p405 = scmp.eq.s32.totalorder %s37, 1
      %p406 = por %p404, %p405
      %p407 = scmp.ne.s32.totalorder %s396, %s397
      %p408 = scmp.eq.s32.totalorder %s37, 0
      %p409 = por %p407, %p408
      %p410 = scmp.ne.s32.totalorder %s396, %s397
      %p411 = scmp.eq.s32.totalorder %s38, 1
      %p412 = por %p410, %p411
      %p414 = scmp.ne.s32.totalorder %s397, %s413
      %p415 = scmp.eq.s32.totalorder %s38, 0
      %p416 = por %p414, %p415
      %p417 = scmp.le.s32.totalorder 1, %s32
      %p418 = scmp.lt.s32.totalorder %s32, 3
      %p419 = pnand %p417, %p418
      %p420 = pneg %p419
      // Predicated region
      $region9: #{bert_lattice_forward.1} parent=5 // pred_check
        _
      $region10: #{bert_lattice_forward.1} parent=5 // pred_check_branch
        %422 = sbr.rel (%p419) target = $region12
      $region11: #{bert_lattice_forward.1} parent=5 // pred_region
        %s423 = ssub.s32 %s32, 1
        // Predicated region
        $region13: #{bert_lattice_forward.1} parent=11 // pred_check
          %p424 = pneg %p131
        $region14: #{bert_lattice_forward.1} parent=11 // pred_check_branch
          %426 = sbr.rel (%p424) target = $region16
        $region15: #{bert_lattice_forward.1} parent=11 // pred_region
          _
        $region16: #{bert_lattice_forward.1} parent=11 // pred_fallthru
          _
        // Predicated region
        $region17: #{bert_lattice_forward.1} parent=11 // pred_check
          %p427 = pneg %p152
        $region18: #{bert_lattice_forward.1} parent=11 // pred_check_branch
          %429 = sbr.rel (%p427) target = $region20
        $region19: #{bert_lattice_forward.1} parent=11 // pred_region
          _
        $region20: #{bert_lattice_forward.1} parent=11 // pred_fallthru
          _
        // Predicated region
        $region21: #{bert_lattice_forward.1} parent=11 // pred_check
          %p430 = pneg %p173
        $region22: #{bert_lattice_forward.1} parent=11 // pred_check_branch
          %432 = sbr.rel (%p430) target = $region24
        $region23: #{bert_lattice_forward.1} parent=11 // pred_region
          _
        $region24: #{bert_lattice_forward.1} parent=11 // pred_fallthru
          _
        // Predicated region
        $region25: #{bert_lattice_forward.1} parent=11 // pred_check
          %p433 = pneg %p194
        $region26: #{bert_lattice_forward.1} parent=11 // pred_check_branch
          %435 = sbr.rel (%p433) target = $region28
        $region27: #{bert_lattice_forward.1} parent=11 // pred_region
          _
        $region28: #{bert_lattice_forward.1} parent=11 // pred_fallthru
          _
        // Predicated region
        $region29: #{bert_lattice_forward.1} parent=11 // pred_check
          %p436 = pneg %p215
        $region30: #{bert_lattice_forward.1} parent=11 // pred_check_branch
          %438 = sbr.rel (%p436) target = $region32
        $region31: #{bert_lattice_forward.1} parent=11 // pred_region
          _
        $region32: #{bert_lattice_forward.1} parent=11 // pred_fallthru
          _
        // Predicated region
        $region33: #{bert_lattice_forward.1} parent=11 // pred_check
          %p439 = pneg %p236
        $region34: #{bert_lattice_forward.1} parent=11 // pred_check_branch
          %441 = sbr.rel (%p439) target = $region36
        $region35: #{bert_lattice_forward.1} parent=11 // pred_region
          _
        $region36: #{bert_lattice_forward.1} parent=11 // pred_fallthru
          _
        // Predicated region
        $region37: #{bert_lattice_forward.1} parent=11 // pred_check
          %p442 = pneg %p257
        $region38: #{bert_lattice_forward.1} parent=11 // pred_check_branch
          %444 = sbr.rel (%p442) target = $region40
        $region39: #{bert_lattice_forward.1} parent=11 // pred_region
          _
        $region40: #{bert_lattice_forward.1} parent=11 // pred_fallthru
          _
        // Predicated region
        $region41: #{bert_lattice_forward.1} parent=11 // pred_check
          %p445 = pneg %p278
        $region42: #{bert_lattice_forward.1} parent=11 // pred_check_branch
          %447 = sbr.rel (%p445) target = $region44
        $region43: #{bert_lattice_forward.1} parent=11 // pred_region
          _
        $region44: #{bert_lattice_forward.1} parent=11 // pred_fallthru
          _
        // Predicated region
        $region45: #{bert_lattice_forward.1} parent=11 // pred_check
          %p448 = pneg %p299
        $region46: #{bert_lattice_forward.1} parent=11 // pred_check_branch
          %450 = sbr.rel (%p448) target = $region48
        $region47: #{bert_lattice_forward.1} parent=11 // pred_region
          _
        $region48: #{bert_lattice_forward.1} parent=11 // pred_fallthru
          _
        // Predicated region
        $region49: #{bert_lattice_forward.1} parent=11 // pred_check
          %p451 = pneg %p320
        $region50: #{bert_lattice_forward.1} parent=11 // pred_check_branch
          %453 = sbr.rel (%p451) target = $region52
        $region51: #{bert_lattice_forward.1} parent=11 // pred_region
          _
        $region52: #{bert_lattice_forward.1} parent=11 // pred_fallthru
          _
        // Predicated region
        $region53: #{bert_lattice_forward.1} parent=11 // pred_check
          %p454 = pneg %p341
        $region54: #{bert_lattice_forward.1} parent=11 // pred_check_branch
          %456 = sbr.rel (%p454) target = $region56
        $region55: #{bert_lattice_forward.1} parent=11 // pred_region
          _
        $region56: #{bert_lattice_forward.1} parent=11 // pred_fallthru
          _
        // Predicated region
        $region57: #{bert_lattice_forward.1} parent=11 // pred_check
          %p457 = pneg %p362
        $region58: #{bert_lattice_forward.1} parent=11 // pred_check_branch
          %459 = sbr.rel (%p457) target = $region60
        $region59: #{bert_lattice_forward.1} parent=11 // pred_region
          _
        $region60: #{bert_lattice_forward.1} parent=11 // pred_fallthru
          _
        // Predicated region
        $region61: #{bert_lattice_forward.1} parent=11 // pred_check
          %p460 = pneg %p383
        $region62: #{bert_lattice_forward.1} parent=11 // pred_check_branch
          %462 = sbr.rel (%p460) target = $region64
        $region63: #{bert_lattice_forward.1} parent=11 // pred_region
          _
        $region64: #{bert_lattice_forward.1} parent=11 // pred_fallthru
          _
      $region12: #{bert_lattice_forward.1} parent=5 // pred_fallthru
        _
      %p463 = scmp.lt.s32.totalorder %s32, 2
      // Predicated region
      $region65: #{bert_lattice_forward.1} parent=5 // pred_check
        %p464 = pneg %p463
      $region66: #{bert_lattice_forward.1} parent=5 // pred_check_branch
        %466 = sbr.rel (%p464) target = $region68
      $region67: #{bert_lattice_forward.1} parent=5 // pred_region
        // Predicated region
        $region69: #{bert_lattice_forward.1} parent=67 // pred_check
          %p467 = pneg %p52
        $region70: #{bert_lattice_forward.1} parent=67 // pred_check_branch
          %469 = sbr.rel (%p467) target = $region72
        $region71: #{bert_lattice_forward.1} parent=67 // pred_region
          %p470 = scmp.lt.s32.totalorder %s32, 1
          %s471 = scalar_select %p470, %s32, 1
          %s472 = smul.addr %s471, 8
          %s473 = scalar_lea.vmem %s1, %s472
        $region72: #{bert_lattice_forward.1} parent=67 // pred_fallthru
          _
        // Predicated region
        $region73: #{bert_lattice_forward.1} parent=67 // pred_check
          %p474 = pneg %p78
        $region74: #{bert_lattice_forward.1} parent=67 // pred_check_branch
          %476 = sbr.rel (%p474) target = $region76
        $region75: #{bert_lattice_forward.1} parent=67 // pred_region
          %p477 = scmp.lt.s32.totalorder %s32, 1
          %s478 = scalar_select %p477, %s32, 1
          %s479 = smul.addr %s478, 8
          %s480 = smul.addr %s479, 8
          %s481 = scalar_lea.vmem %s2, %s480
        $region76: #{bert_lattice_forward.1} parent=67 // pred_fallthru
          _
        // Predicated region
        $region77: #{bert_lattice_forward.1} parent=67 // pred_check
          %p482 = pneg %p104
        $region78: #{bert_lattice_forward.1} parent=67 // pred_check_branch
          %484 = sbr.rel (%p482) target = $region80
        $region79: #{bert_lattice_forward.1} parent=67 // pred_region
          %p485 = scmp.lt.s32.totalorder %s32, 1
          %s486 = scalar_select %p485, %s32, 1
          %s487 = smul.addr %s486, 8
          %s488 = smul.addr %s487, 8
          %s489 = scalar_lea.vmem %s3, %s488
        $region80: #{bert_lattice_forward.1} parent=67 // pred_fallthru
          _
      $region68: #{bert_lattice_forward.1} parent=5 // pred_fallthru
        _
      %p490 = scmp.le.s32.totalorder 1, %s32
      %p491 = scmp.lt.s32.totalorder %s32, 3
      %p492 = pnand %p490, %p491
      %p493 = pneg %p492
      // Predicated region
      $region81: #{bert_lattice_forward.1} parent=5 // pred_check
        _
      $region82: #{bert_lattice_forward.1} parent=5 // pred_check_branch
        %495 = sbr.rel (%p492) target = $region84
      $region83: #{bert_lattice_forward.1} parent=5 // pred_region
        %s496 = ssub.s32 %s32, 1
        %p497 = scmp.lt.s32.totalorder %s37, 1
        %s498 = scalar_select %p497, %s37, 1
        %s499 = smul.addr %s498, 8
        %s500 = scalar_lea.vmem %s1, %s499
        %p501 = pneg %p58
        %p502 = pneg %p55
        %p503 = scmp.lt.s32.totalorder %s37, 1
        %s504 = scalar_select %p503, %s37, 1
        %s505 = smul.addr %s504, 8
        %s506 = smul.addr %s505, 8
        %s507 = scalar_lea.vmem %s2, %s506
        %p508 = pneg %p84
        %p509 = pneg %p81
        %p510 = scmp.lt.s32.totalorder %s37, 1
        %s511 = scalar_select %p510, %s37, 1
        %s512 = smul.addr %s511, 8
        %s513 = smul.addr %s512, 8
        %s514 = scalar_lea.vmem %s3, %s513
        %p515 = pneg %p110
        %p516 = pneg %p107
        %p517 = pneg %p131
        %p518 = pneg %p128
        %p519 = pneg %p152
        %p520 = pneg %p149
        %p521 = pneg %p173
        %p522 = pneg %p170
        %p523 = pneg %p194
        %p524 = pneg %p191
        %p525 = pneg %p215
        %p526 = pneg %p212
        %p527 = pneg %p236
        %p528 = pneg %p233
        %p529 = pneg %p257
        %p530 = pneg %p254
        %p531 = pneg %p278
        %p532 = pneg %p275
        %p533 = pneg %p299
        %p534 = pneg %p296
        %p535 = pneg %p320
        %p536 = pneg %p317
        %p537 = pneg %p341
        %p538 = pneg %p338
        %p539 = pneg %p362
        %p540 = pneg %p359
        %p541 = pneg %p383
        %p542 = pneg %p380
        %p543 = pneg %p409
        %p544 = pneg %p406
        %s545 = sand.u32 %s396, 1
        %s546 = scalar_lea.sflag [#allocation5], %s545
        %s547 = sand.u32 %s396, 1
        %s548 = smul.addr %s547, 8
        %s549 = scalar_lea.vmem [#allocation4], %s548
        %p550 = scmp.lt.s32.totalorder %s37, 1
        %s551 = scalar_select %p550, %s37, 1
        %s552 = smul.addr %s551, 8
        %s553 = scalar_lea.vmem %s1, %s552
        %p554 = scmp.lt.s32.totalorder %s37, 1
        %s555 = scalar_select %p554, %s37, 1
        %s556 = smul.addr %s555, 8
        %s557 = smul.addr %s556, 8
        %s558 = scalar_lea.vmem %s2, %s557
        %p559 = scmp.lt.s32.totalorder %s37, 1
        %s560 = scalar_select %p559, %s37, 1
        %s561 = smul.addr %s560, 8
        %s562 = smul.addr %s561, 8
        %s563 = scalar_lea.vmem %s3, %s562
        %s564 = sld [smem:[#allocation3 + %s37]]
        %v565 = vld [vmem:[%s553] sm:$0xff]
        %v566 = vld [vmem:[%s558] sm:$0xff]
        %v567 = vld [vmem:[%s558 + $0x8] sm:$0xff]
        %v568 = vld [vmem:[%s558 + $0x10] sm:$0xff]
        %v569 = vld [vmem:[%s558 + $0x18] sm:$0xff]
        %v570 = vld [vmem:[%s558 + $0x20] sm:$0xff]
        %v571 = vld [vmem:[%s558 + $0x28] sm:$0xff]
        %v572 = vld [vmem:[%s558 + $0x30] sm:$0xff]
        %v573 = vld [vmem:[%s558 + $0x38] sm:$0xff]
        %v574 = vld [vmem:[%s563] sm:$0xff]
        %v575 = vld [vmem:[%s563 + $0x8] sm:$0xff]
        %v576 = vld [vmem:[%s563 + $0x10] sm:$0xff]
        %v577 = vld [vmem:[%s563 + $0x18] sm:$0xff]
        %v578 = vld [vmem:[%s563 + $0x20] sm:$0xff]
        %v579 = vld [vmem:[%s563 + $0x28] sm:$0xff]
        %v580 = vld [vmem:[%s563 + $0x30] sm:$0xff]
        %v581 = vld [vmem:[%s563 + $0x38] sm:$0xff]
        %v582 = vld [vmem:[%s4] sm:$0xff]
        %v583 = vld [vmem:[%s4 + $0x8] sm:$0xff]
        %v584 = vld [vmem:[%s4 + $0x10] sm:$0xff]
        %v585 = vld [vmem:[%s4 + $0x18] sm:$0xff]
        %v586 = vld [vmem:[%s4 + $0x20] sm:$0xff]
        %v587 = vld [vmem:[%s4 + $0x28] sm:$0xff]
        %v588 = vld [vmem:[%s4 + $0x30] sm:$0xff]
        %v589 = vld [vmem:[%s4 + $0x38] sm:$0xff]
        %v590 = vld [vmem:[%s5] sm:$0x1]
        %v592 = vlaneseq
        %v593 = vshrl.u32 %v592, 7
        %v594 = vsub.s32 0, %v593
        %v595 = vrot.slane %v590, %v594
        %vm597 = vcmask 523264
        %v599 = vsel %vm597, %v574, 0
        %v602 = vsel %vm597, %v575, 0
        %v605 = vsel %vm597, %v576, 0
        %v608 = vsel %vm597, %v577, 0
        %v611 = vsel %vm597, %v578, 0
        %v614 = vsel %vm597, %v579, 0
        %v617 = vsel %vm597, %v580, 0
        %v620 = vsel %vm597, %v581, 0
        %622 = vmatprep.subr.mxu0 0.0
        %623 = vmatpush1.msra.mxu0 %v582
        %624 = vmatprep.subr.mxu0 0.0
        %625 = vmatpush1.msra.mxu0 %v583
        %626 = vmatprep.subr.mxu0 0.0
        %627 = vmatpush1.msra.mxu0 %v584
        %628 = vmatprep.subr.mxu0 0.0
        %629 = vmatpush1.msra.mxu0 %v585
        %630 = vmatprep.subr.mxu0 0.0
        %631 = vmatpush1.msra.mxu0 %v586
        %632 = vmatprep.subr.mxu0 0.0
        %633 = vmatpush1.msra.mxu0 %v587
        %634 = vmatprep.subr.mxu0 0.0
        %635 = vmatpush1.msra.mxu0 %v588
        %636 = vmatprep.subr.mxu0 0.0
        %637 = vmatpush1.msra.mxu0 %v589
        %638 = vmatprep.subr.mxu0 0.0
        %639 = vmatpush1.msra.mxu0 0.0
        %640 = vmatprep.subr.mxu0 0.0
        %641 = vmatpush1.msra.mxu0 0.0
        %642 = vmatprep.subr.mxu0 0.0
        %643 = vmatpush1.msra.mxu0 0.0
        %644 = vmatprep.subr.mxu0 0.0
        %645 = vmatpush1.msra.mxu0 0.0
        %646 = vmatprep.subr.mxu0 0.0
        %647 = vmatpush1.msra.mxu0 0.0
        %648 = vmatprep.subr.mxu0 0.0
        %649 = vmatpush1.msra.mxu0 0.0
        %650 = vmatprep.subr.mxu0 0.0
        %651 = vmatpush1.msra.mxu0 0.0
        %652 = vmatprep.subr.mxu0 0.0
        %653 = vmatpush1.msra.mxu0 0.0
        %654 = vmatprep.subr.mxu0 0.0
        %655 = vmatpush1.msra.mxu0 0.0
        %656 = vmatprep.subr.mxu0 0.0
        %657 = vmatpush1.msra.mxu0 0.0
        %658 = vmatprep.subr.mxu0 0.0
        %659 = vmatpush1.msra.mxu0 0.0
        %660 = vmatprep.subr.mxu0 0.0
        %661 = vmatpush1.msra.mxu0 0.0
        %662 = vmatprep.subr.mxu0 0.0
        %663 = vmatpush1.msra.mxu0 0.0
        %664 = vmatprep.subr.mxu0 0.0
        %665 = vmatpush1.msra.mxu0 0.0
        %666 = vmatprep.subr.mxu0 0.0
        %667 = vmatpush1.msra.mxu0 0.0
        %668 = vmatprep.subr.mxu0 0.0
        %669 = vmatpush1.msra.mxu0 0.0
        %670 = vmatprep.subr.mxu0 0.0
        %671 = vmatpush1.msra.mxu0 0.0
        %672 = vmatprep.subr.mxu0 0.0
        %673 = vmatpush1.msra.mxu0 0.0
        %674 = vmatprep.subr.mxu0 0.0
        %675 = vmatpush1.msra.mxu0 0.0
        %676 = vmatprep.subr.mxu0 0.0
        %677 = vmatpush1.msra.mxu0 0.0
        %678 = vmatprep.subr.mxu0 0.0
        %679 = vmatpush1.msra.mxu0 0.0
        %680 = vmatprep.subr.mxu0 0.0
        %681 = vmatpush1.msra.mxu0 0.0
        %682 = vmatprep.subr.mxu0 0.0
        %683 = vmatpush1.msra.mxu0 0.0
        %684 = vmatprep.subr.mxu0 0.0
        %685 = vmatpush1.msra.mxu0 0.0
        %686 = vmatprep.mubr.f32.mxu0 0.0
        %687 = vmatmul.mubr.f32.gmra.mrb[0].mxu0 %v599
        %v688 = vpop.f32.mrb[0].mxu0
        %v689 = vadd.f32 %v595, %v688
        %v690 = vpop.f32.mrb[0].mxu0
        %691 = vmatprep.mubr.f32.mxu0 0.0
        %692 = vmatmul.mubr.f32.gmra.mrb[0].mxu0 %v602
        %v693 = vpop.f32.mrb[0].mxu0
        %v694 = vadd.f32 %v595, %v693
        %v695 = vpop.f32.mrb[0].mxu0
        %696 = vmatprep.mubr.f32.mxu0 0.0
        %697 = vmatmul.mubr.f32.gmra.mrb[0].mxu0 %v605
        %v698 = vpop.f32.mrb[0].mxu0
        %v699 = vadd.f32 %v595, %v698
        %v700 = vpop.f32.mrb[0].mxu0
        %701 = vmatprep.mubr.f32.mxu0 0.0
        %702 = vmatmul.mubr.f32.gmra.mrb[0].mxu0 %v608
        %v703 = vpop.f32.mrb[0].mxu0
        %v704 = vadd.f32 %v595, %v703
        %v705 = vpop.f32.mrb[0].mxu0
        %706 = vmatprep.mubr.f32.mxu0 0.0
        %707 = vmatmul.mubr.f32.gmra.mrb[0].mxu0 %v611
        %v708 = vpop.f32.mrb[0].mxu0
        %v709 = vadd.f32 %v595, %v708
        %v710 = vpop.f32.mrb[0].mxu0
        %711 = vmatprep.mubr.f32.mxu0 0.0
        %712 = vmatmul.mubr.f32.gmra.mrb[0].mxu0 %v614
        %v713 = vpop.f32.mrb[0].mxu0
        %v714 = vadd.f32 %v595, %v713
        %v715 = vpop.f32.mrb[0].mxu0
        %716 = vmatprep.mubr.f32.mxu0 0.0
        %717 = vmatmul.mubr.f32.gmra.mrb[0].mxu0 %v617
        %v718 = vpop.f32.mrb[0].mxu0
        %v719 = vadd.f32 %v595, %v718
        %v720 = vpop.f32.mrb[0].mxu0
        %721 = vmatprep.mubr.f32.mxu0 0.0
        %722 = vmatmul.mubr.f32.gmra.mrb[0].mxu0 %v620
        %v723 = vpop.f32.mrb[0].mxu0
        %v724 = vadd.f32 %v595, %v723
        %v725 = vpop.f32.mrb[0].mxu0
        %726 = vdwg.mxu0
        %v727 = vmax.f32 %v689, 0.0
        %v728 = vmax.f32 %v694, 0.0
        %v729 = vmax.f32 %v699, 0.0
        %v730 = vmax.f32 %v704, 0.0
        %v731 = vmax.f32 %v709, 0.0
        %v732 = vmax.f32 %v714, 0.0
        %v733 = vmax.f32 %v719, 0.0
        %v734 = vmax.f32 %v724, 0.0
        %v735 = vld [vmem:[%s9] sm:$0xff]
        %v736 = vld [vmem:[%s9 + $0x8] sm:$0xff]
        %v737 = vld [vmem:[%s9 + $0x10] sm:$0xff]
        %v738 = vld [vmem:[%s9 + $0x18] sm:$0xff]
        %v739 = vld [vmem:[%s10] sm:$0x1]
        %v741 = vlaneseq
        %v742 = vshrl.u32 %v741, 7
        %v743 = vsub.s32 0, %v742
        %v744 = vrot.slane %v739, %v743
        %vm746 = vcmask 261120
        %v748 = vsel %vm746, %v727, 0
        %v751 = vsel %vm746, %v728, 0
        %v754 = vsel %vm746, %v729, 0
        %v757 = vsel %vm746, %v730, 0
        %v760 = vsel %vm746, %v731, 0
        %v763 = vsel %vm746, %v732, 0
        %v766 = vsel %vm746, %v733, 0
        %v769 = vsel %vm746, %v734, 0
        %771 = vmatprep.subr.mxu0 0.0
        %772 = vmatpush1.msra.mxu0 %v735
        %773 = vmatprep.subr.mxu0 0.0
        %774 = vmatpush1.msra.mxu0 %v736
        %775 = vmatprep.subr.mxu0 0.0
        %776 = vmatpush1.msra.mxu0 %v737
        %777 = vmatprep.subr.mxu0 0.0
        %778 = vmatpush1.msra.mxu0 %v738
        %779 = vmatprep.subr.mxu0 0.0
        %780 = vmatpush1.msra.mxu0 0.0
        %781 = vmatprep.subr.mxu0 0.0
        %782 = vmatpush1.msra.mxu0 0.0
        %783 = vmatprep.subr.mxu0 0.0
        %784 = vmatpush1.msra.mxu0 0.0
        %785 = vmatprep.subr.mxu0 0.0
        %786 = vmatpush1.msra.mxu0 0.0
        %787 = vmatprep.subr.mxu0 0.0
        %788 = vmatpush1.msra.mxu0 0.0
        %789 = vmatprep.subr.mxu0 0.0
        %790 = vmatpush1.msra.mxu0 0.0
        %791 = vmatprep.subr.mxu0 0.0
        %792 = vmatpush1.msra.mxu0 0.0
        %793 = vmatprep.subr.mxu0 0.0
        %794 = vmatpush1.msra.mxu0 0.0
        %795 = vmatprep.subr.mxu0 0.0
        %796 = vmatpush1.msra.mxu0 0.0
        %797 = vmatprep.subr.mxu0 0.0
        %798 = vmatpush1.msra.mxu0 0.0
        %799 = vmatprep.subr.mxu0 0.0
        %800 = vmatpush1.msra.mxu0 0.0
        %801 = vmatprep.subr.mxu0 0.0
        %802 = vmatpush1.msra.mxu0 0.0
        %803 = vmatprep.subr.mxu0 0.0
        %804 = vmatpush1.msra.mxu0 0.0
        %805 = vmatprep.subr.mxu0 0.0
        %806 = vmatpush1.msra.mxu0 0.0
        %807 = vmatprep.subr.mxu0 0.0
        %808 = vmatpush1.msra.mxu0 0.0
        %809 = vmatprep.subr.mxu0 0.0
        %810 = vmatpush1.msra.mxu0 0.0
        %811 = vmatprep.subr.mxu0 0.0
        %812 = vmatpush1.msra.mxu0 0.0
        %813 = vmatprep.subr.mxu0 0.0
        %814 = vmatpush1.msra.mxu0 0.0
        %815 = vmatprep.subr.mxu0 0.0
        %816 = vmatpush1.msra.mxu0 0.0
        %817 = vmatprep.subr.mxu0 0.0
        %818 = vmatpush1.msra.mxu0 0.0
        %819 = vmatprep.subr.mxu0 0.0
        %820 = vmatpush1.msra.mxu0 0.0
        %821 = vmatprep.subr.mxu0 0.0
        %822 = vmatpush1.msra.mxu0 0.0
        %823 = vmatprep.subr.mxu0 0.0
        %824 = vmatpush1.msra.mxu0 0.0
        %825 = vmatprep.subr.mxu0 0.0
        %826 = vmatpush1.msra.mxu0 0.0
        %827 = vmatprep.subr.mxu0 0.0
        %828 = vmatpush1.msra.mxu0 0.0
        %829 = vmatprep.subr.mxu0 0.0
        %830 = vmatpush1.msra.mxu0 0.0
        %831 = vmatprep.subr.mxu0 0.0
        %832 = vmatpush1.msra.mxu0 0.0
        %833 = vmatprep.subr.mxu0 0.0
        %834 = vmatpush1.msra.mxu0 0.0
        %835 = vmatprep.mubr.f32.mxu0 0.0
        %836 = vmatmul.mubr.f32.gmra.mrb[0].mxu0 %v748
        %v837 = vpop.f32.mrb[0].mxu0
        %v838 = vadd.f32 %v744, %v837
        %v839 = vpop.f32.mrb[0].mxu0
        %840 = vmatprep.mubr.f32.mxu0 0.0
        %841 = vmatmul.mubr.f32.gmra.mrb[0].mxu0 %v751
        %v842 = vpop.f32.mrb[0].mxu0
        %v843 = vadd.f32 %v744, %v842
        %v844 = vpop.f32.mrb[0].mxu0
        %845 = vmatprep.mubr.f32.mxu0 0.0
        %846 = vmatmul.mubr.f32.gmra.mrb[0].mxu0 %v754
        %v847 = vpop.f32.mrb[0].mxu0
        %v848 = vadd.f32 %v744, %v847
        %v849 = vpop.f32.mrb[0].mxu0
        %850 = vmatprep.mubr.f32.mxu0 0.0
        %851 = vmatmul.mubr.f32.gmra.mrb[0].mxu0 %v757
        %v852 = vpop.f32.mrb[0].mxu0
        %v853 = vadd.f32 %v744, %v852
        %v854 = vpop.f32.mrb[0].mxu0
        %855 = vmatprep.mubr.f32.mxu0 0.0
        %856 = vmatmul.mubr.f32.gmra.mrb[0].mxu0 %v760
        %v857 = vpop.f32.mrb[0].mxu0
        %v858 = vadd.f32 %v744, %v857
        %v859 = vpop.f32.mrb[0].mxu0
        %860 = vmatprep.mubr.f32.mxu0 0.0
        %861 = vmatmul.mubr.f32.gmra.mrb[0].mxu0 %v763
        %v862 = vpop.f32.mrb[0].mxu0
        %v863 = vadd.f32 %v744, %v862
        %v864 = vpop.f32.mrb[0].mxu0
        %865 = vmatprep.mubr.f32.mxu0 0.0
        %866 = vmatmul.mubr.f32.gmra.mrb[0].mxu0 %v766
        %v867 = vpop.f32.mrb[0].mxu0
        %v868 = vadd.f32 %v744, %v867
        %v869 = vpop.f32.mrb[0].mxu0
        %870 = vmatprep.mubr.f32.mxu0 0.0
        %871 = vmatmul.mubr.f32.gmra.mrb[0].mxu0 %v769
        %v872 = vpop.f32.mrb[0].mxu0
        %v873 = vadd.f32 %v744, %v872
        %v874 = vpop.f32.mrb[0].mxu0
        %875 = vdwg.mxu0
        %v876 = vld [vmem:[%s6] sm:$0xff]
        %v877 = vld [vmem:[%s6 + $0x8] sm:$0xff]
        %v878 = vld [vmem:[%s6 + $0x10] sm:$0xff]
        %v879 = vld [vmem:[%s6 + $0x18] sm:$0xff]
        %v880 = vld [vmem:[%s6 + $0x20] sm:$0xff]
        %v881 = vld [vmem:[%s6 + $0x28] sm:$0xff]
        %v882 = vld [vmem:[%s6 + $0x30] sm:$0xff]
        %v883 = vld [vmem:[%s6 + $0x38] sm:$0xff]
        %v884 = vld [vmem:[%s6 + $0x40] sm:$0xff]
        %v885 = vld [vmem:[%s6 + $0x48] sm:$0xff]
        %v886 = vld [vmem:[%s6 + $0x50] sm:$0xff]
        %v887 = vld [vmem:[%s6 + $0x58] sm:$0xff]
        %v888 = vld [vmem:[%s7] sm:$0x1]
        %v890 = vlaneseq
        %v891 = vshrl.u32 %v890, 7
        %v892 = vsub.s32 0, %v891
        %v893 = vrot.slane %v888, %v892
        %vm895 = vcmask 785408
        %v897 = vsel %vm895, %v566, 0
        %v900 = vsel %vm895, %v567, 0
        %v903 = vsel %vm895, %v568, 0
        %v906 = vsel %vm895, %v569, 0
        %v909 = vsel %vm895, %v570, 0
        %v912 = vsel %vm895, %v571, 0
        %v915 = vsel %vm895, %v572, 0
        %v918 = vsel %vm895, %v573, 0
        %920 = vmatprep.subr.mxu0 0.0
        %921 = vmatpush1.msra.mxu0 %v876
        %922 = vmatprep.subr.mxu0 0.0
        %923 = vmatpush1.msra.mxu0 %v877
        %924 = vmatprep.subr.mxu0 0.0
        %925 = vmatpush1.msra.mxu0 %v878
        %926 = vmatprep.subr.mxu0 0.0
        %927 = vmatpush1.msra.mxu0 %v879
        %928 = vmatprep.subr.mxu0 0.0
        %929 = vmatpush1.msra.mxu0 %v880
        %930 = vmatprep.subr.mxu0 0.0
        %931 = vmatpush1.msra.mxu0 %v881
        %932 = vmatprep.subr.mxu0 0.0
        %933 = vmatpush1.msra.mxu0 %v882
        %934 = vmatprep.subr.mxu0 0.0
        %935 = vmatpush1.msra.mxu0 %v883
        %936 = vmatprep.subr.mxu0 0.0
        %937 = vmatpush1.msra.mxu0 %v884
        %938 = vmatprep.subr.mxu0 0.0
        %939 = vmatpush1.msra.mxu0 %v885
        %940 = vmatprep.subr.mxu0 0.0
        %941 = vmatpush1.msra.mxu0 %v886
        %942 = vmatprep.subr.mxu0 0.0
        %943 = vmatpush1.msra.mxu0 %v887
        %944 = vmatprep.subr.mxu0 0.0
        %945 = vmatpush1.msra.mxu0 0.0
        %946 = vmatprep.subr.mxu0 0.0
        %947 = vmatpush1.msra.mxu0 0.0
        %948 = vmatprep.subr.mxu0 0.0
        %949 = vmatpush1.msra.mxu0 0.0
        %950 = vmatprep.subr.mxu0 0.0
        %951 = vmatpush1.msra.mxu0 0.0
        %952 = vmatprep.subr.mxu0 0.0
        %953 = vmatpush1.msra.mxu0 0.0
        %954 = vmatprep.subr.mxu0 0.0
        %955 = vmatpush1.msra.mxu0 0.0
        %956 = vmatprep.subr.mxu0 0.0
        %957 = vmatpush1.msra.mxu0 0.0
        %958 = vmatprep.subr.mxu0 0.0
        %959 = vmatpush1.msra.mxu0 0.0
        %960 = vmatprep.subr.mxu0 0.0
        %961 = vmatpush1.msra.mxu0 0.0
        %962 = vmatprep.subr.mxu0 0.0
        %963 = vmatpush1.msra.mxu0 0.0
        %964 = vmatprep.subr.mxu0 0.0
        %965 = vmatpush1.msra.mxu0 0.0
        %966 = vmatprep.subr.mxu0 0.0
        %967 = vmatpush1.msra.mxu0 0.0
        %968 = vmatprep.subr.mxu0 0.0
        %969 = vmatpush1.msra.mxu0 0.0
        %970 = vmatprep.subr.mxu0 0.0
        %971 = vmatpush1.msra.mxu0 0.0
        %972 = vmatprep.subr.mxu0 0.0
        %973 = vmatpush1.msra.mxu0 0.0
        %974 = vmatprep.subr.mxu0 0.0
        %975 = vmatpush1.msra.mxu0 0.0
        %976 = vmatprep.subr.mxu0 0.0
        %977 = vmatpush1.msra.mxu0 0.0
        %978 = vmatprep.subr.mxu0 0.0
        %979 = vmatpush1.msra.mxu0 0.0
        %980 = vmatprep.subr.mxu0 0.0
        %981 = vmatpush1.msra.mxu0 0.0
        %982 = vmatprep.subr.mxu0 0.0
        %983 = vmatpush1.msra.mxu0 0.0
        %984 = vmatprep.mubr.f32.mxu0 0.0
        %985 = vmatmul.mubr.f32.gmra.mrb[0].mxu0 %v897
        %v986 = vpop.f32.mrb[0].mxu0
        %v987 = vadd.f32 %v893, %v986
        %v988 = vpop.f32.mrb[0].mxu0
        %989 = vmatprep.mubr.f32.mxu0 0.0
        %990 = vmatmul.mubr.f32.gmra.mrb[0].mxu0 %v900
        %v991 = vpop.f32.mrb[0].mxu0
        %v992 = vadd.f32 %v893, %v991
        %v993 = vpop.f32.mrb[0].mxu0
        %994 = vmatprep.mubr.f32.mxu0 0.0
        %995 = vmatmul.mubr.f32.gmra.mrb[0].mxu0 %v903
        %v996 = vpop.f32.mrb[0].mxu0
        %v997 = vadd.f32 %v893, %v996
        %v998 = vpop.f32.mrb[0].mxu0
        %999 = vmatprep.mubr.f32.mxu0 0.0
        %1000 = vmatmul.mubr.f32.gmra.mrb[0].mxu0 %v906
        %v1001 = vpop.f32.mrb[0].mxu0
        %v1002 = vadd.f32 %v893, %v1001
        %v1003 = vpop.f32.mrb[0].mxu0
        %1004 = vmatprep.mubr.f32.mxu0 0.0
        %1005 = vmatmul.mubr.f32.gmra.mrb[0].mxu0 %v909
        %v1006 = vpop.f32.mrb[0].mxu0
        %v1007 = vadd.f32 %v893, %v1006
        %v1008 = vpop.f32.mrb[0].mxu0
        %1009 = vmatprep.mubr.f32.mxu0 0.0
        %1010 = vmatmul.mubr.f32.gmra.mrb[0].mxu0 %v912
        %v1011 = vpop.f32.mrb[0].mxu0
        %v1012 = vadd.f32 %v893, %v1011
        %v1013 = vpop.f32.mrb[0].mxu0
        %1014 = vmatprep.mubr.f32.mxu0 0.0
        %1015 = vmatmul.mubr.f32.gmra.mrb[0].mxu0 %v915
        %v1016 = vpop.f32.mrb[0].mxu0
        %v1017 = vadd.f32 %v893, %v1016
        %v1018 = vpop.f32.mrb[0].mxu0
        %1019 = vmatprep.mubr.f32.mxu0 0.0
        %1020 = vmatmul.mubr.f32.gmra.mrb[0].mxu0 %v918
        %v1021 = vpop.f32.mrb[0].mxu0
        %v1022 = vadd.f32 %v893, %v1021
        %v1023 = vpop.f32.mrb[0].mxu0
        %1024 = vdwg.mxu0
        %v1025 = vld [vmem:[%s8] sm:$0x1]
        %v1026 = vlaneseq
        %v1027 = vshrl.u32 %v1026, 7
        %v1028 = vsub.s32 0, %v1027
        %v1029 = vrot.slane %v1025, %v1028
        %v1030 = vadd.f32 %v987, %v1029
        %v1031 = vadd.f32 %v992, %v1029
        %v1032 = vadd.f32 %v997, %v1029
        %v1033 = vadd.f32 %v1002, %v1029
        %v1034 = vadd.f32 %v1007, %v1029
        %v1035 = vadd.f32 %v1012, %v1029
        %v1036 = vadd.f32 %v1017, %v1029
        %v1037 = vadd.f32 %v1022, %v1029
        %v1038 = vld [vmem:[%s8 + $0x1] sm:$0x1]
        %v1039 = vlaneseq
        %v1040 = vshrl.u32 %v1039, 7
        %v1041 = vsub.s32 0, %v1040
        %v1042 = vrot.slane %v1038, %v1041
        %v1043 = vadd.f32 %v987, %v1042
        %v1044 = vadd.f32 %v992, %v1042
        %v1045 = vadd.f32 %v997, %v1042
        %v1046 = vadd.f32 %v1002, %v1042
        %v1047 = vadd.f32 %v1007, %v1042
        %v1048 = vadd.f32 %v1012, %v1042
        %v1049 = vadd.f32 %v1017, %v1042
        %v1050 = vadd.f32 %v1022, %v1042
        %1059 = vrot.lane.b32.xlu0 %v987, 96
        %v1060 = vpop.permute.xlu0 %1059
        %1061 = vrot.lane.b32.xlu0 %v992, 96
        %v1062 = vpop.permute.xlu0 %1061
        %1063 = vrot.lane.b32.xlu0 %v997, 96
        %v1064 = vpop.permute.xlu0 %1063
        %1065 = vrot.lane.b32.xlu0 %v1002, 96
        %v1066 = vpop.permute.xlu0 %1065
        %1067 = vrot.lane.b32.xlu0 %v1007, 96
        %v1068 = vpop.permute.xlu0 %1067
        %1069 = vrot.lane.b32.xlu0 %v1012, 96
        %v1070 = vpop.permute.xlu0 %1069
        %1071 = vrot.lane.b32.xlu0 %v1017, 96
        %v1072 = vpop.permute.xlu0 %1071
        %1073 = vrot.lane.b32.xlu0 %v1022, 96
        %v1074 = vpop.permute.xlu0 %1073
        %v1083 = vmul.f32 %v1030, %v1060
        %v1084 = vmul.f32 %v1031, %v1062
        %v1085 = vmul.f32 %v1032, %v1064
        %v1086 = vmul.f32 %v1033, %v1066
        %v1087 = vmul.f32 %v1034, %v1068
        %v1088 = vmul.f32 %v1035, %v1070
        %v1089 = vmul.f32 %v1036, %v1072
        %v1090 = vmul.f32 %v1037, %v1074
        %v1091 = vmul.f32 %v1043, %v838
        %v1092 = vmul.f32 %v1044, %v843
        %v1093 = vmul.f32 %v1045, %v848
        %v1094 = vmul.f32 %v1046, %v853
        %v1095 = vmul.f32 %v1047, %v858
        %v1096 = vmul.f32 %v1048, %v863
        %v1097 = vmul.f32 %v1049, %v868
        %v1098 = vmul.f32 %v1050, %v873
        %v1099 = vadd.f32 %v1083, %v1091
        %v1100 = vadd.f32 %v1084, %v1092
        %v1101 = vadd.f32 %v1085, %v1093
        %v1102 = vadd.f32 %v1086, %v1094
        %v1103 = vadd.f32 %v1087, %v1095
        %v1104 = vadd.f32 %v1088, %v1096
        %v1105 = vadd.f32 %v1089, %v1097
        %v1106 = vadd.f32 %v1090, %v1098
        %v1107 = vld [vmem:[%s11] sm:$0xff]
        %v1108 = vld [vmem:[%s11 + $0x8] sm:$0xff]
        %v1109 = vld [vmem:[%s11 + $0x10] sm:$0xff]
        %v1110 = vld [vmem:[%s11 + $0x18] sm:$0xff]
        %v1112 = vsel %vm746, %v1099, 0
        %v1115 = vsel %vm746, %v1100, 0
        %v1118 = vsel %vm746, %v1101, 0
        %v1121 = vsel %vm746, %v1102, 0
        %v1124 = vsel %vm746, %v1103, 0
        %v1127 = vsel %vm746, %v1104, 0
        %v1130 = vsel %vm746, %v1105, 0
        %v1133 = vsel %vm746, %v1106, 0
        %1135 = vmatprep.subr.mxu0 0.0
        %1136 = vmatpush1.msra.mxu0 %v1107
        %1137 = vmatprep.subr.mxu0 0.0
        %1138 = vmatpush1.msra.mxu0 %v1108
        %1139 = vmatprep.subr.mxu0 0.0
        %1140 = vmatpush1.msra.mxu0 %v1109
        %1141 = vmatprep.subr.mxu0 0.0
        %1142 = vmatpush1.msra.mxu0 %v1110
        %1143 = vmatprep.subr.mxu0 0.0
        %1144 = vmatpush1.msra.mxu0 0.0
        %1145 = vmatprep.subr.mxu0 0.0
        %1146 = vmatpush1.msra.mxu0 0.0
        %1147 = vmatprep.subr.mxu0 0.0
        %1148 = vmatpush1.msra.mxu0 0.0
        %1149 = vmatprep.subr.mxu0 0.0
        %1150 = vmatpush1.msra.mxu0 0.0
        %1151 = vmatprep.subr.mxu0 0.0
        %1152 = vmatpush1.msra.mxu0 0.0
        %1153 = vmatprep.subr.mxu0 0.0
        %1154 = vmatpush1.msra.mxu0 0.0
        %1155 = vmatprep.subr.mxu0 0.0
        %1156 = vmatpush1.msra.mxu0 0.0
        %1157 = vmatprep.subr.mxu0 0.0
        %1158 = vmatpush1.msra.mxu0 0.0
        %1159 = vmatprep.subr.mxu0 0.0
        %1160 = vmatpush1.msra.mxu0 0.0
        %1161 = vmatprep.subr.mxu0 0.0
        %1162 = vmatpush1.msra.mxu0 0.0
        %1163 = vmatprep.subr.mxu0 0.0
        %1164 = vmatpush1.msra.mxu0 0.0
        %1165 = vmatprep.subr.mxu0 0.0
        %1166 = vmatpush1.msra.mxu0 0.0
        %1167 = vmatprep.subr.mxu0 0.0
        %1168 = vmatpush1.msra.mxu0 0.0
        %1169 = vmatprep.subr.mxu0 0.0
        %1170 = vmatpush1.msra.mxu0 0.0
        %1171 = vmatprep.subr.mxu0 0.0
        %1172 = vmatpush1.msra.mxu0 0.0
        %1173 = vmatprep.subr.mxu0 0.0
        %1174 = vmatpush1.msra.mxu0 0.0
        %1175 = vmatprep.subr.mxu0 0.0
        %1176 = vmatpush1.msra.mxu0 0.0
        %1177 = vmatprep.subr.mxu0 0.0
        %1178 = vmatpush1.msra.mxu0 0.0
        %1179 = vmatprep.subr.mxu0 0.0
        %1180 = vmatpush1.msra.mxu0 0.0
        %1181 = vmatprep.subr.mxu0 0.0
        %1182 = vmatpush1.msra.mxu0 0.0
        %1183 = vmatprep.subr.mxu0 0.0
        %1184 = vmatpush1.msra.mxu0 0.0
        %1185 = vmatprep.subr.mxu0 0.0
        %1186 = vmatpush1.msra.mxu0 0.0
        %1187 = vmatprep.subr.mxu0 0.0
        %1188 = vmatpush1.msra.mxu0 0.0
        %1189 = vmatprep.subr.mxu0 0.0
        %1190 = vmatpush1.msra.mxu0 0.0
        %1191 = vmatprep.subr.mxu0 0.0
        %1192 = vmatpush1.msra.mxu0 0.0
        %1193 = vmatprep.subr.mxu0 0.0
        %1194 = vmatpush1.msra.mxu0 0.0
        %1195 = vmatprep.subr.mxu0 0.0
        %1196 = vmatpush1.msra.mxu0 0.0
        %1197 = vmatprep.subr.mxu0 0.0
        %1198 = vmatpush1.msra.mxu0 0.0
        %1199 = vmatprep.mubr.f32.mxu0 0.0
        %1200 = vmatmul.mubr.f32.gmra.mrb[0].mxu0 %v1112
        %v1201 = vpop.f32.mrb[0].mxu0
        %v1202 = vadd.f32 0.0, %v1201
        %v1203 = vpop.f32.mrb[0].mxu0
        %1204 = vmatprep.mubr.f32.mxu0 0.0
        %1205 = vmatmul.mubr.f32.gmra.mrb[0].mxu0 %v1115
        %v1206 = vpop.f32.mrb[0].mxu0
        %v1207 = vadd.f32 0.0, %v1206
        %v1208 = vpop.f32.mrb[0].mxu0
        %1209 = vmatprep.mubr.f32.mxu0 0.0
        %1210 = vmatmul.mubr.f32.gmra.mrb[0].mxu0 %v1118
        %v1211 = vpop.f32.mrb[0].mxu0
        %v1212 = vadd.f32 0.0, %v1211
        %v1213 = vpop.f32.mrb[0].mxu0
        %1214 = vmatprep.mubr.f32.mxu0 0.0
        %1215 = vmatmul.mubr.f32.gmra.mrb[0].mxu0 %v1121
        %v1216 = vpop.f32.mrb[0].mxu0
        %v1217 = vadd.f32 0.0, %v1216
        %v1218 = vpop.f32.mrb[0].mxu0
        %1219 = vmatprep.mubr.f32.mxu0 0.0
        %1220 = vmatmul.mubr.f32.gmra.mrb[0].mxu0 %v1124
        %v1221 = vpop.f32.mrb[0].mxu0
        %v1222 = vadd.f32 0.0, %v1221
        %v1223 = vpop.f32.mrb[0].mxu0
        %1224 = vmatprep.mubr.f32.mxu0 0.0
        %1225 = vmatmul.mubr.f32.gmra.mrb[0].mxu0 %v1127
        %v1226 = vpop.f32.mrb[0].mxu0
        %v1227 = vadd.f32 0.0, %v1226
        %v1228 = vpop.f32.mrb[0].mxu0
        %1229 = vmatprep.mubr.f32.mxu0 0.0
        %1230 = vmatmul.mubr.f32.gmra.mrb[0].mxu0 %v1130
        %v1231 = vpop.f32.mrb[0].mxu0
        %v1232 = vadd.f32 0.0, %v1231
        %v1233 = vpop.f32.mrb[0].mxu0
        %1234 = vmatprep.mubr.f32.mxu0 0.0
        %1235 = vmatmul.mubr.f32.gmra.mrb[0].mxu0 %v1133
        %v1236 = vpop.f32.mrb[0].mxu0
        %v1237 = vadd.f32 0.0, %v1236
        %v1238 = vpop.f32.mrb[0].mxu0
        %1239 = vdwg.mxu0
        %v1240 = vlaneseq
        %v1241 = vshrl.u32 %v1240, 7
        %v1242 = vadd.s32 %v1241, 8
        %v1243 = vadd.s32 %v1241, 16
        %v1244 = vadd.s32 %v1241, 24
        %v1245 = vadd.s32 %v1241, 32
        %v1246 = vadd.s32 %v1241, 40
        %v1247 = vadd.s32 %v1241, 48
        %v1248 = vadd.s32 %v1241, 56
        %v1249 = vand.u32 %v1241, 7
        %v1250 = vand.u32 %v1242, 7
        %v1251 = vand.u32 %v1243, 7
        %v1252 = vand.u32 %v1244, 7
        %v1253 = vand.u32 %v1245, 7
        %v1254 = vand.u32 %v1246, 7
        %v1255 = vand.u32 %v1247, 7
        %v1256 = vand.u32 %v1248, 7
        %v1257 = vstv %s564
        %vm1258 = vcmp.lt.s32.totalorder %v1249, %v1257
        %vm1259 = vcmp.lt.s32.totalorder %v1250, %v1257
        %vm1260 = vcmp.lt.s32.totalorder %v1251, %v1257
        %vm1261 = vcmp.lt.s32.totalorder %v1252, %v1257
        %vm1262 = vcmp.lt.s32.totalorder %v1253, %v1257
        %vm1263 = vcmp.lt.s32.totalorder %v1254, %v1257
        %vm1264 = vcmp.lt.s32.totalorder %v1255, %v1257
        %vm1265 = vcmp.lt.s32.totalorder %v1256, %v1257
        %v1266 = vsel %vm1258, %v1202, -1e+15
        %v1267 = vsel %vm1259, %v1207, -1e+15
        %v1268 = vsel %vm1260, %v1212, -1e+15
        %v1269 = vsel %vm1261, %v1217, -1e+15
        %v1270 = vsel %vm1262, %v1222, -1e+15
        %v1271 = vsel %vm1263, %v1227, -1e+15
        %v1272 = vsel %vm1264, %v1232, -1e+15
        %v1273 = vsel %vm1265, %v1237, -1e+15
        %v1274 = vmul.f32 %v1266, 1.442695
        %v1275 = vpow.pop %v1274
        %v1276 = vmul.f32 %v1267, 1.442695
        %v1277 = vpow.pop %v1276
        %v1278 = vmul.f32 %v1268, 1.442695
        %v1279 = vpow.pop %v1278
        %v1280 = vmul.f32 %v1269, 1.442695
        %v1281 = vpow.pop %v1280
        %v1282 = vmul.f32 %v1270, 1.442695
        %v1283 = vpow.pop %v1282
        %v1284 = vmul.f32 %v1271, 1.442695
        %v1285 = vpow.pop %v1284
        %v1286 = vmul.f32 %v1272, 1.442695
        %v1287 = vpow.pop %v1286
        %v1288 = vmul.f32 %v1273, 1.442695
        %v1289 = vpow.pop %v1288
        %v1290 = vld [vmem:[%s12] sm:$0xff]
        %1291 = vrot.lane.b32.xlu0 %v987, 64
        %v1292 = vpop.permute.xlu0 %1291
        %1293 = vrot.lane.b32.xlu0 %v992, 64
        %v1294 = vpop.permute.xlu0 %1293
        %1295 = vrot.lane.b32.xlu0 %v997, 64
        %v1296 = vpop.permute.xlu0 %1295
        %1297 = vrot.lane.b32.xlu0 %v1002, 64
        %v1298 = vpop.permute.xlu0 %1297
        %1299 = vrot.lane.b32.xlu0 %v1007, 64
        %v1300 = vpop.permute.xlu0 %1299
        %1301 = vrot.lane.b32.xlu0 %v1012, 64
        %v1302 = vpop.permute.xlu0 %1301
        %1303 = vrot.lane.b32.xlu0 %v1017, 64
        %v1304 = vpop.permute.xlu0 %1303
        %1305 = vrot.lane.b32.xlu0 %v1022, 64
        %v1306 = vpop.permute.xlu0 %1305
        %v1315 = vmul.f32 %v1275, %v1292
        %v1316 = vmul.f32 %v1277, %v1294
        %v1317 = vmul.f32 %v1279, %v1296
        %v1318 = vmul.f32 %v1281, %v1298
        %v1319 = vmul.f32 %v1283, %v1300
        %v1320 = vmul.f32 %v1285, %v1302
        %v1321 = vmul.f32 %v1287, %v1304
        %v1322 = vmul.f32 %v1289, %v1306
        %v1324 = vsel %vm597, %v1290, 0
        %1326 = vmatprep.subr.mxu0 0.0
        %1327 = vmatpush1.msra.mxu0 %v1315
        %1328 = vmatprep.subr.mxu0 0.0
        %1329 = vmatpush1.msra.mxu0 %v1316
        %1330 = vmatprep.subr.mxu0 0.0
        %1331 = vmatpush1.msra.mxu0 %v1317
        %1332 = vmatprep.subr.mxu0 0.0
        %1333 = vmatpush1.msra.mxu0 %v1318
        %1334 = vmatprep.subr.mxu0 0.0
        %1335 = vmatpush1.msra.mxu0 %v1319
        %1336 = vmatprep.subr.mxu0 0.0
        %1337 = vmatpush1.msra.mxu0 %v1320
        %1338 = vmatprep.subr.mxu0 0.0
        %1339 = vmatpush1.msra.mxu0 %v1321
        %1340 = vmatprep.subr.mxu0 0.0
        %1341 = vmatpush1.msra.mxu0 %v1322
        %1342 = vmatprep.subr.mxu0 0.0
        %1343 = vmatpush1.msra.mxu0 0.0
        %1344 = vmatprep.subr.mxu0 0.0
        %1345 = vmatpush1.msra.mxu0 0.0
        %1346 = vmatprep.subr.mxu0 0.0
        %1347 = vmatpush1.msra.mxu0 0.0
        %1348 = vmatprep.subr.mxu0 0.0
        %1349 = vmatpush1.msra.mxu0 0.0
        %1350 = vmatprep.subr.mxu0 0.0
        %1351 = vmatpush1.msra.mxu0 0.0
        %1352 = vmatprep.subr.mxu0 0.0
        %1353 = vmatpush1.msra.mxu0 0.0
        %1354 = vmatprep.subr.mxu0 0.0
        %1355 = vmatpush1.msra.mxu0 0.0
        %1356 = vmatprep.subr.mxu0 0.0
        %1357 = vmatpush1.msra.mxu0 0.0
        %1358 = vmatprep.subr.mxu0 0.0
        %1359 = vmatpush1.msra.mxu0 0.0
        %1360 = vmatprep.subr.mxu0 0.0
        %1361 = vmatpush1.msra.mxu0 0.0
        %1362 = vmatprep.subr.mxu0 0.0
        %1363 = vmatpush1.msra.mxu0 0.0
        %1364 = vmatprep.subr.mxu0 0.0
        %1365 = vmatpush1.msra.mxu0 0.0
        %1366 = vmatprep.subr.mxu0 0.0
        %1367 = vmatpush1.msra.mxu0 0.0
        %1368 = vmatprep.subr.mxu0 0.0
        %1369 = vmatpush1.msra.mxu0 0.0
        %1370 = vmatprep.subr.mxu0 0.0
        %1371 = vmatpush1.msra.mxu0 0.0
        %1372 = vmatprep.subr.mxu0 0.0
        %1373 = vmatpush1.msra.mxu0 0.0
        %1374 = vmatprep.subr.mxu0 0.0
        %1375 = vmatpush1.msra.mxu0 0.0
        %1376 = vmatprep.subr.mxu0 0.0
        %1377 = vmatpush1.msra.mxu0 0.0
        %1378 = vmatprep.subr.mxu0 0.0
        %1379 = vmatpush1.msra.mxu0 0.0
        %1380 = vmatprep.subr.mxu0 0.0
        %1381 = vmatpush1.msra.mxu0 0.0
        %1382 = vmatprep.subr.mxu0 0.0
        %1383 = vmatpush1.msra.mxu0 0.0
        %1384 = vmatprep.subr.mxu0 0.0
        %1385 = vmatpush1.msra.mxu0 0.0
        %1386 = vmatprep.subr.mxu0 0.0
        %1387 = vmatpush1.msra.mxu0 0.0
        %1388 = vmatprep.subr.mxu0 0.0
        %1389 = vmatpush1.msra.mxu0 0.0
        %1390 = vmatprep.mubr.f32.mxu0 0.0
        %1391 = vmatmul.mubr.f32.gmra.mrb[0].mxu0 %v1324
        %v1392 = vpop.f32.mrb[0].mxu0
        %v1393 = vadd.f32 0.0, %v1392
        %v1394 = vpop.f32.mrb[0].mxu0
        %1395 = vdwg.mxu0
        %1396 = vmatprep.subr.mxu0 0.0
        %1397 = vmatpush1.msra.mxu0 %v1275
        %1398 = vmatprep.subr.mxu0 0.0
        %1399 = vmatpush1.msra.mxu0 %v1277
        %1400 = vmatprep.subr.mxu0 0.0
        %1401 = vmatpush1.msra.mxu0 %v1279
        %1402 = vmatprep.subr.mxu0 0.0
        %1403 = vmatpush1.msra.mxu0 %v1281
        %1404 = vmatprep.subr.mxu0 0.0
        %1405 = vmatpush1.msra.mxu0 %v1283
        %1406 = vmatprep.subr.mxu0 0.0
        %1407 = vmatpush1.msra.mxu0 %v1285
        %1408 = vmatprep.subr.mxu0 0.0
        %1409 = vmatpush1.msra.mxu0 %v1287
        %1410 = vmatprep.subr.mxu0 0.0
        %1411 = vmatpush1.msra.mxu0 %v1289
        %1412 = vmatprep.subr.mxu0 0.0
        %1413 = vmatpush1.msra.mxu0 0.0
        %1414 = vmatprep.subr.mxu0 0.0
        %1415 = vmatpush1.msra.mxu0 0.0
        %1416 = vmatprep.subr.mxu0 0.0
        %1417 = vmatpush1.msra.mxu0 0.0
        %1418 = vmatprep.subr.mxu0 0.0
        %1419 = vmatpush1.msra.mxu0 0.0
        %1420 = vmatprep.subr.mxu0 0.0
        %1421 = vmatpush1.msra.mxu0 0.0
        %1422 = vmatprep.subr.mxu0 0.0
        %1423 = vmatpush1.msra.mxu0 0.0
        %1424 = vmatprep.subr.mxu0 0.0
        %1425 = vmatpush1.msra.mxu0 0.0
        %1426 = vmatprep.subr.mxu0 0.0
        %1427 = vmatpush1.msra.mxu0 0.0
        %1428 = vmatprep.subr.mxu0 0.0
        %1429 = vmatpush1.msra.mxu0 0.0
        %1430 = vmatprep.subr.mxu0 0.0
        %1431 = vmatpush1.msra.mxu0 0.0
        %1432 = vmatprep.subr.mxu0 0.0
        %1433 = vmatpush1.msra.mxu0 0.0
        %1434 = vmatprep.subr.mxu0 0.0
        %1435 = vmatpush1.msra.mxu0 0.0
        %1436 = vmatprep.subr.mxu0 0.0
        %1437 = vmatpush1.msra.mxu0 0.0
        %1438 = vmatprep.subr.mxu0 0.0
        %1439 = vmatpush1.msra.mxu0 0.0
        %1440 = vmatprep.subr.mxu0 0.0
        %1441 = vmatpush1.msra.mxu0 0.0
        %1442 = vmatprep.subr.mxu0 0.0
        %1443 = vmatpush1.msra.mxu0 0.0
        %1444 = vmatprep.subr.mxu0 0.0
        %1445 = vmatpush1.msra.mxu0 0.0
        %1446 = vmatprep.subr.mxu0 0.0
        %1447 = vmatpush1.msra.mxu0 0.0
        %1448 = vmatprep.subr.mxu0 0.0
        %1449 = vmatpush1.msra.mxu0 0.0
        %1450 = vmatprep.subr.mxu0 0.0
        %1451 = vmatpush1.msra.mxu0 0.0
        %1452 = vmatprep.subr.mxu0 0.0
        %1453 = vmatpush1.msra.mxu0 0.0
        %1454 = vmatprep.subr.mxu0 0.0
        %1455 = vmatpush1.msra.mxu0 0.0
        %1456 = vmatprep.subr.mxu0 0.0
        %1457 = vmatpush1.msra.mxu0 0.0
        %1458 = vmatprep.subr.mxu0 0.0
        %1459 = vmatpush1.msra.mxu0 0.0
        %1460 = vmatprep.mubr.f32.mxu0 0.0
        %1461 = vmatmul.mubr.f32.gmra.mrb[0].mxu0 %v1324
        %v1462 = vpop.f32.mrb[0].mxu0
        %v1463 = vadd.f32 0.0, %v1462
        %v1464 = vpop.f32.mrb[0].mxu0
        %1465 = vdwg.mxu0
        %v1466 = vmax.f32 %v1463, 1e-30
        %v1467 = vrcp.pop %v1466
        %v1468 = vmul.f32 %v1393, %v1467
        %v1469 = vadd.f32 %v565, %v1468
        %v1470 = vsel %vm746, %v1469, 0.0
        %1471 = vadd.xlane.f32.xlu0 %v1470
        %v1472 = vpop.xlane.xlu0 %1471
        %v1473 = vrcp.pop 32.0
        %v1474 = vmul.f32 %v1472, %v1473
        %v1475 = vsub.f32 %v1469, %v1474
        %v1476 = vmul.f32 %v1475, %v1475
        %v1477 = vsel %vm746, %v1476, 0.0
        %1478 = vadd.xlane.f32.xlu0 %v1477
        %v1479 = vpop.xlane.xlu0 %1478
        %v1480 = vmul.f32 %v1479, %v1473
        %v1481 = vadd.f32 %v1480, 1e-05
        %v1482 = vrsqrt.pop %v1481
        %v1483 = vmul.f32 %v1475, %v1482
        %v1484 = vld [vmem:[%s13] sm:$0xff]
        %v1485 = vld [vmem:[%s13 + $0x8] sm:$0xff]
        %v1486 = vld [vmem:[%s13 + $0x10] sm:$0xff]
        %v1487 = vld [vmem:[%s13 + $0x18] sm:$0xff]
        %v1488 = vld [vmem:[%s14] sm:$0x1]
        %v1490 = vlaneseq
        %v1491 = vshrl.u32 %v1490, 7
        %v1492 = vsub.s32 0, %v1491
        %v1493 = vrot.slane %v1488, %v1492
        %v1496 = vsel %vm746, %v1483, 0
        %1498 = vmatprep.subr.mxu0 0.0
        %1499 = vmatpush1.msra.mxu0 %v1484
        %1500 = vmatprep.subr.mxu0 0.0
        %1501 = vmatpush1.msra.mxu0 %v1485
        %1502 = vmatprep.subr.mxu0 0.0
        %1503 = vmatpush1.msra.mxu0 %v1486
        %1504 = vmatprep.subr.mxu0 0.0
        %1505 = vmatpush1.msra.mxu0 %v1487
        %1506 = vmatprep.subr.mxu0 0.0
        %1507 = vmatpush1.msra.mxu0 0.0
        %1508 = vmatprep.subr.mxu0 0.0
        %1509 = vmatpush1.msra.mxu0 0.0
        %1510 = vmatprep.subr.mxu0 0.0
        %1511 = vmatpush1.msra.mxu0 0.0
        %1512 = vmatprep.subr.mxu0 0.0
        %1513 = vmatpush1.msra.mxu0 0.0
        %1514 = vmatprep.subr.mxu0 0.0
        %1515 = vmatpush1.msra.mxu0 0.0
        %1516 = vmatprep.subr.mxu0 0.0
        %1517 = vmatpush1.msra.mxu0 0.0
        %1518 = vmatprep.subr.mxu0 0.0
        %1519 = vmatpush1.msra.mxu0 0.0
        %1520 = vmatprep.subr.mxu0 0.0
        %1521 = vmatpush1.msra.mxu0 0.0
        %1522 = vmatprep.subr.mxu0 0.0
        %1523 = vmatpush1.msra.mxu0 0.0
        %1524 = vmatprep.subr.mxu0 0.0
        %1525 = vmatpush1.msra.mxu0 0.0
        %1526 = vmatprep.subr.mxu0 0.0
        %1527 = vmatpush1.msra.mxu0 0.0
        %1528 = vmatprep.subr.mxu0 0.0
        %1529 = vmatpush1.msra.mxu0 0.0
        %1530 = vmatprep.subr.mxu0 0.0
        %1531 = vmatpush1.msra.mxu0 0.0
        %1532 = vmatprep.subr.mxu0 0.0
        %1533 = vmatpush1.msra.mxu0 0.0
        %1534 = vmatprep.subr.mxu0 0.0
        %1535 = vmatpush1.msra.mxu0 0.0
        %1536 = vmatprep.subr.mxu0 0.0
        %1537 = vmatpush1.msra.mxu0 0.0
        %1538 = vmatprep.subr.mxu0 0.0
        %1539 = vmatpush1.msra.mxu0 0.0
        %1540 = vmatprep.subr.mxu0 0.0
        %1541 = vmatpush1.msra.mxu0 0.0
        %1542 = vmatprep.subr.mxu0 0.0
        %1543 = vmatpush1.msra.mxu0 0.0
        %1544 = vmatprep.subr.mxu0 0.0
        %1545 = vmatpush1.msra.mxu0 0.0
        %1546 = vmatprep.subr.mxu0 0.0
        %1547 = vmatpush1.msra.mxu0 0.0
        %1548 = vmatprep.subr.mxu0 0.0
        %1549 = vmatpush1.msra.mxu0 0.0
        %1550 = vmatprep.subr.mxu0 0.0
        %1551 = vmatpush1.msra.mxu0 0.0
        %1552 = vmatprep.subr.mxu0 0.0
        %1553 = vmatpush1.msra.mxu0 0.0
        %1554 = vmatprep.subr.mxu0 0.0
        %1555 = vmatpush1.msra.mxu0 0.0
        %1556 = vmatprep.subr.mxu0 0.0
        %1557 = vmatpush1.msra.mxu0 0.0
        %1558 = vmatprep.subr.mxu0 0.0
        %1559 = vmatpush1.msra.mxu0 0.0
        %1560 = vmatprep.subr.mxu0 0.0
        %1561 = vmatpush1.msra.mxu0 0.0
        %1562 = vmatprep.mubr.f32.mxu0 0.0
        %1563 = vmatmul.mubr.f32.gmra.mrb[0].mxu0 %v1496
        %v1564 = vpop.f32.mrb[0].mxu0
        %v1565 = vadd.f32 %v1493, %v1564
        %v1566 = vpop.f32.mrb[0].mxu0
        %1567 = vdwg.mxu0
        %v1568 = vmax.f32 %v1565, 0.0
        %v1569 = vld [vmem:[%s15] sm:$0xff]
        %v1570 = vld [vmem:[%s15 + $0x8] sm:$0xff]
        %v1571 = vld [vmem:[%s15 + $0x10] sm:$0xff]
        %v1572 = vld [vmem:[%s15 + $0x18] sm:$0xff]
        %v1573 = vld [vmem:[%s15 + $0x20] sm:$0xff]
        %v1574 = vld [vmem:[%s15 + $0x28] sm:$0xff]
        %v1575 = vld [vmem:[%s15 + $0x30] sm:$0xff]
        %v1576 = vld [vmem:[%s15 + $0x38] sm:$0xff]
        %v1577 = vld [vmem:[%s16] sm:$0x1]
        %v1579 = vlaneseq
        %v1580 = vshrl.u32 %v1579, 7
        %v1581 = vsub.s32 0, %v1580
        %v1582 = vrot.slane %v1577, %v1581
        %v1585 = vsel %vm597, %v1568, 0
        %1587 = vmatprep.subr.mxu0 0.0
        %1588 = vmatpush1.msra.mxu0 %v1569
        %1589 = vmatprep.subr.mxu0 0.0
        %1590 = vmatpush1.msra.mxu0 %v1570
        %1591 = vmatprep.subr.mxu0 0.0
        %1592 = vmatpush1.msra.mxu0 %v1571
        %1593 = vmatprep.subr.mxu0 0.0
        %1594 = vmatpush1.msra.mxu0 %v1572
        %1595 = vmatprep.subr.mxu0 0.0
        %1596 = vmatpush1.msra.mxu0 %v1573
        %1597 = vmatprep.subr.mxu0 0.0
        %1598 = vmatpush1.msra.mxu0 %v1574
        %1599 = vmatprep.subr.mxu0 0.0
        %1600 = vmatpush1.msra.mxu0 %v1575
        %1601 = vmatprep.subr.mxu0 0.0
        %1602 = vmatpush1.msra.mxu0 %v1576
        %1603 = vmatprep.subr.mxu0 0.0
        %1604 = vmatpush1.msra.mxu0 0.0
        %1605 = vmatprep.subr.mxu0 0.0
        %1606 = vmatpush1.msra.mxu0 0.0
        %1607 = vmatprep.subr.mxu0 0.0
        %1608 = vmatpush1.msra.mxu0 0.0
        %1609 = vmatprep.subr.mxu0 0.0
        %1610 = vmatpush1.msra.mxu0 0.0
        %1611 = vmatprep.subr.mxu0 0.0
        %1612 = vmatpush1.msra.mxu0 0.0
        %1613 = vmatprep.subr.mxu0 0.0
        %1614 = vmatpush1.msra.mxu0 0.0
        %1615 = vmatprep.subr.mxu0 0.0
        %1616 = vmatpush1.msra.mxu0 0.0
        %1617 = vmatprep.subr.mxu0 0.0
        %1618 = vmatpush1.msra.mxu0 0.0
        %1619 = vmatprep.subr.mxu0 0.0
        %1620 = vmatpush1.msra.mxu0 0.0
        %1621 = vmatprep.subr.mxu0 0.0
        %1622 = vmatpush1.msra.mxu0 0.0
        %1623 = vmatprep.subr.mxu0 0.0
        %1624 = vmatpush1.msra.mxu0 0.0
        %1625 = vmatprep.subr.mxu0 0.0
        %1626 = vmatpush1.msra.mxu0 0.0
        %1627 = vmatprep.subr.mxu0 0.0
        %1628 = vmatpush1.msra.mxu0 0.0
        %1629 = vmatprep.subr.mxu0 0.0
        %1630 = vmatpush1.msra.mxu0 0.0
        %1631 = vmatprep.subr.mxu0 0.0
        %1632 = vmatpush1.msra.mxu0 0.0
        %1633 = vmatprep.subr.mxu0 0.0
        %1634 = vmatpush1.msra.mxu0 0.0
        %1635 = vmatprep.subr.mxu0 0.0
        %1636 = vmatpush1.msra.mxu0 0.0
        %1637 = vmatprep.subr.mxu0 0.0
        %1638 = vmatpush1.msra.mxu0 0.0
        %1639 = vmatprep.subr.mxu0 0.0
        %1640 = vmatpush1.msra.mxu0 0.0
        %1641 = vmatprep.subr.mxu0 0.0
        %1642 = vmatpush1.msra.mxu0 0.0
        %1643 = vmatprep.subr.mxu0 0.0
        %1644 = vmatpush1.msra.mxu0 0.0
        %1645 = vmatprep.subr.mxu0 0.0
        %1646 = vmatpush1.msra.mxu0 0.0
        %1647 = vmatprep.subr.mxu0 0.0
        %1648 = vmatpush1.msra.mxu0 0.0
        %1649 = vmatprep.subr.mxu0 0.0
        %1650 = vmatpush1.msra.mxu0 0.0
        %1651 = vmatprep.mubr.f32.mxu0 0.0
        %1652 = vmatmul.mubr.f32.gmra.mrb[0].mxu0 %v1585
        %v1653 = vpop.f32.mrb[0].mxu0
        %v1654 = vadd.f32 %v1582, %v1653
        %v1655 = vpop.f32.mrb[0].mxu0
        %1656 = vdwg.mxu0
        %v1657 = vmax.f32 %v1654, 0.0
        %v1658 = vadd.f32 %v1657, %v1483
        %v1659 = vsel %vm746, %v1658, 0.0
        %1660 = vadd.xlane.f32.xlu0 %v1659
        %v1661 = vpop.xlane.xlu0 %1660
        %v1662 = vmul.f32 %v1661, %v1473
        %v1663 = vsub.f32 %v1658, %v1662
        %v1664 = vmul.f32 %v1663, %v1663
        %v1665 = vsel %vm746, %v1664, 0.0
        %1666 = vadd.xlane.f32.xlu0 %v1665
        %v1667 = vpop.xlane.xlu0 %1666
        %v1668 = vmul.f32 %v1667, %v1473
        %v1669 = vadd.f32 %v1668, 1e-05
        %v1670 = vrsqrt.pop %v1669
        %v1671 = vmul.f32 %v1663, %v1670
        %1672 = vst.msk [vmem:[%s549] sm:$0xff] %vm746, %v1671
        %s1673 = sand.u32 %s396, 1
        %s1674 = scalar_lea.sflag [#allocation5], %s1673
        %s1675 = sand.u32 %s396, 1
        %s1676 = smul.addr %s1675, 8
        %s1677 = scalar_lea.vmem [#allocation4], %s1676
        // Predicated region
        $region85: #{bert_lattice_forward.1} parent=83 // pred_check
          %p1678 = pneg %p406
        $region86: #{bert_lattice_forward.1} parent=83 // pred_check_branch
          %1680 = sbr.rel (%p1678) target = $region88
        $region87: #{bert_lattice_forward.1} parent=83 // pred_region
          %s1682 = ssub.s32 128, 128
          %1683 = vsyncadd %s1674, %s1682
          %s1684 = smul.addr %s37, 128
          %s1685 = scalar_lea.hbm %s17, %s1684
          %s1687 = sshll.u32 %s1677, 4
          %s1688 = int_to_ptr.vmem [resolvable:$true] %s1687
          %1690 = dma.vmem_to_hbm [thread:$0]  %s1688, 128, %s1685, %s1674
        $region88: #{bert_lattice_forward.1} parent=83 // pred_fallthru
          _
      $region84: #{bert_lattice_forward.1} parent=5 // pred_fallthru
        _
      %p1691 = scmp.le.s32.totalorder 2, %s32
      // Predicated region
      $region89: #{bert_lattice_forward.1} parent=5 // pred_check
        %p1692 = pneg %p1691
      $region90: #{bert_lattice_forward.1} parent=5 // pred_check_branch
        %1694 = sbr.rel (%p1692) target = $region92
      $region91: #{bert_lattice_forward.1} parent=5 // pred_region
        %s1695 = ssub.s32 %s32, 2
        // Predicated region
        $region93: #{bert_lattice_forward.1} parent=91 // pred_check
          %p1696 = pneg %p412
        $region94: #{bert_lattice_forward.1} parent=91 // pred_check_branch
          %1698 = sbr.rel (%p1696) target = $region96
        $region95: #{bert_lattice_forward.1} parent=91 // pred_region
          %s1699 = sand.u32 %s397, 1
          %s1700 = scalar_lea.sflag [#allocation5], %s1699
          %s1701 = sand.u32 %s397, 1
          %s1702 = smul.addr %s1701, 8
          %s1703 = scalar_lea.vmem [#allocation4], %s1702
          %1704 = dma.done %s1700, 128
        $region96: #{bert_lattice_forward.1} parent=91 // pred_fallthru
          _
      $region92: #{bert_lattice_forward.1} parent=5 // pred_fallthru
        _
    $region6: #{bert_lattice_forward.1} parent=1 // loop_footer
      %s36 = sadd.s32 1, %s32
    $region7: #{bert_lattice_forward.1} parent=1 // loop_footer_branch
      %31 = sbr.rel target = $region3
    $region8: #{bert_lattice_forward.1} parent=1 // loop_exit
      _
    %1705 = vsyncpa [#allocation5], 1
    %s1706 = scalar_lea.sflag [#allocation5], 1
    %1707 = vsyncpa %s1706, 1

</llo_original>
